<compile_context>
chip_gen: v7x
topology: tpu7x:2x2x1
jax: 0.10.0
libtpu: 0.0.40
codegen_flags: <defaults>
</compile_context>

<pallas_src>
import jax
import jax.numpy as jnp
from jax import lax
from jax.experimental import pallas as pl
from jax.experimental.pallas import tpu as pltpu


# ----------------------------- config -------------------------------------
class Config:
    hidden_dim = 32          # config.hidden_dim
    embedding_dim = 32       # BERT hidden size / config.embedding_dim
    num_activities = 16
    num_outcomes = 4
    outcome_head_input_dim = 32  # == embedding_dim (no loop_features)
    vocab_size = 16
    max_seq = 8


CFG = Config()

E = CFG.embedding_dim
H2 = CFG.hidden_dim // 2
A = CFG.num_activities
O = CFG.num_outcomes
FF = 2 * E
LANE = 128                      # lane-dense padded width for logit outputs

# column offsets inside the E-input weight rows of the merged slab
_QKV0, _QKV1 = 0, 3 * E         # q | k | v            (wq pre-scaled by 1/sqrt(E))
_WO0, _WO1 = 3 * E, 4 * E       # attention output proj
_W10, _W11 = 4 * E, 4 * E + FF  # FFN up
_WSH0, _WSH1 = _W11, _W11 + E   # shared_hidden
_WNA10, _WNA11 = _WSH1, _WSH1 + H2    # next_activity_head L1
_WOC10, _WOC11 = _WNA11, _WNA11 + H2  # outcome_head L1
WA_COLS = _WOC11                # 256

# bias row indices inside the bias sub-block of the merged slab
(_BQ, _BK, _BV, _BO, _LN1G, _LN1B, _B1, _B2, _LN2G, _LN2B,
 _BSH, _BNA1, _BNA2, _BOC1, _BOC2) = range(15)
BIAS_ROWS = 16

# merged-slab row offsets: [wa | w2 | wh | bias]
_WA_R0 = 0
_W2_R0 = E                      # 32  : FFN down projection rows
_WH_R0 = E + FF                 # 96  : head L2 weights (wna2 | woc2)
_BIAS_R0 = E + FF + H2          # 112 : bias rows
SLAB_ROWS = _BIAS_R0 + BIAS_ROWS   # 128
SLAB_COLS = 2 * LANE               # 256

# output packing: outcome logits live in spare lanes of sequence row 0
OUT_LANE0 = 64
OUT_LANES = 64


# ----------------------------- kernel --------------------------------------
def _layernorm(h, g, b, eps=1e-12):
    # var as mean(x*x) - mu*mu: the two reductions issue back-to-back on the XLU.
    mu = jnp.mean(h, axis=-1, keepdims=True)
    ms = jnp.mean(h * h, axis=-1, keepdims=True)
    var = jnp.maximum(ms - mu * mu, 0.0)
    return (h - mu) * lax.rsqrt(var + eps) * g + b


def fused_kernel(x_ref, amask_ref, pmask_ref, w_ref, out_ref):
    """Fused single-head encoder layer + next-activity head + pooling + outcome head.

    Processes BB batch elements per grid step; all weights come from one merged
    lane-dense slab (static ref slices).
    """
    BB, S, E_ = x_ref.shape
    x = x_ref[...].reshape(BB * S, E_)          # per-token rows   [BB*S, E]
    am = amask_ref[...]                         # attention mask   [BB, 1, S]
    pm = pmask_ref[...].reshape(BB * S, 1)      # padding mask     [BB*S, 1]

    def wa(c0, c1):                             # E-input weight columns
        return w_ref[_WA_R0:_WA_R0 + E_, c0:c1]

    def bias(row, width=LANE):                  # bias rows (static slice)
        r = _BIAS_R0 + row
        return w_ref[r:r + 1, 0:width]

    # ---- attention: fused q|k|v projection (1/sqrt(E) folded into wq/bq) ----
    qkv = jnp.dot(x, wa(_QKV0, _QKV1),
                  preferred_element_type=jnp.float32)              # [BB*S, 3E]
    q = (qkv[:, 0:E_] + bias(_BQ, E_)).reshape(BB, S, E_)
    k = (qkv[:, E_:2 * E_] + bias(_BK, E_)).reshape(BB, S, E_)
    v = (qkv[:, 2 * E_:3 * E_] + bias(_BV, E_)).reshape(BB, S, E_)

    # scores[b,i,j] = q[b,i,:] . k[b,j,:]   (contract last dims, no transpose)
    scores = lax.dot_general(q, k, (((2,), (2,)), ((0,), (0,))),
                             preferred_element_type=jnp.float32)   # [BB, S, S]
    scores = scores + (am - 1.0) * 1e9                             # mask padded keys
    scores = scores - jnp.max(scores, axis=-1, keepdims=True)
    p = jnp.exp(scores)
    p = p * pl.reciprocal(jnp.sum(p, axis=-1, keepdims=True), approx=True)

    ctx = lax.dot_general(p, v, (((2,), (1,)), ((0,), (0,))),
                          preferred_element_type=jnp.float32)      # [BB, S, E]
    ctx = ctx.reshape(BB * S, E_)
    attn = jnp.dot(ctx, wa(_WO0, _WO1),
                   preferred_element_type=jnp.float32) + bias(_BO, E_)
    h1 = _layernorm(x + attn, bias(_LN1G, E_), bias(_LN1B, E_))

    ffn = jnp.maximum(
        jnp.dot(h1, wa(_W10, _W11),
                preferred_element_type=jnp.float32) + bias(_B1, FF), 0.0)
    ffn = jnp.dot(ffn, w_ref[_W2_R0:_W2_R0 + FF, 0:E_],
                  preferred_element_type=jnp.float32) + bias(_B2, E_)
    h = _layernorm(h1 + ffn, bias(_LN2G, E_), bias(_LN2B, E_))     # [BB*S, E]

    # ---- next_activity_head: Linear -> ReLU -> Linear (dropout = identity) ----
    t1 = jnp.maximum(
        jnp.dot(h, wa(_WNA10, _WNA11),
                preferred_element_type=jnp.float32) + bias(_BNA1, H2), 0.0)
    logits = jnp.dot(t1, w_ref[_WH_R0:_WH_R0 + H2, 0:LANE],
                     preferred_element_type=jnp.float32) + bias(_BNA2, LANE)

    pad = pm > 0.5                                                 # [BB*S, 1]
    lane0 = lax.broadcasted_iota(jnp.int32, logits.shape, 1) == 0
    logits = jnp.where(pad, jnp.float32(-jnp.inf), logits)
    logits = jnp.where(pad & lane0, jnp.float32(jnp.inf), logits)

    # ---- masked mean pooling over sequence (expressed as a matmul) ----
    h3 = h.reshape(BB, S, E_)
    sum_emb = lax.dot_general(am, h3, (((2,), (1,)), ((0,), (0,))),
                              preferred_element_type=jnp.float32)  # [BB, 1, E]
    denom = jnp.maximum(jnp.sum(am, axis=2, keepdims=True), 1e-9)  # [BB, 1, 1]
    pooled = (sum_emb * pl.reciprocal(denom, approx=True)).reshape(BB, E_)

    # ---- shared hidden + ReLU (+ dropout identity) ----
    pooled = jnp.maximum(
        jnp.dot(pooled, wa(_WSH0, _WSH1),
                preferred_element_type=jnp.float32) + bias(_BSH, E_), 0.0)

    # ---- outcome_head: Linear -> ReLU -> Linear ----
    t2 = jnp.maximum(
        jnp.dot(pooled, wa(_WOC10, _WOC11),
                preferred_element_type=jnp.float32) + bias(_BOC1, H2), 0.0)
    outcome = jnp.dot(t2, w_ref[_WH_R0:_WH_R0 + H2, LANE:2 * LANE],
                      preferred_element_type=jnp.float32) + bias(_BOC2, LANE)

    # ---- compressed output: one lane-dense store of the logits slab, plus one
    #      small partial store packing the outcome logits into spare lanes of
    #      sequence row 0 (lanes 64..). No concat, no zero-fill rows. ----
    out_ref[...] = logits.reshape(BB, S, LANE)
    out_ref[:, 0:1, OUT_LANE0:OUT_LANE0 + OUT_LANES] = (
        outcome[:, 0:OUT_LANES].reshape(BB, 1, OUT_LANES))


# ----------------------------- wrapper --------------------------------------
def _tensorcores_per_chip() -> int:
    """1 TC on v5e/v6e, 2 on v7x. Defaults to 1 if the query is unavailable."""
    try:
        info = pltpu.get_tpu_info()
        for attr in ("num_cores", "core_count", "tensorcores_per_chip",
                     "num_tensorcores"):
            n = getattr(info, attr, None)
            if isinstance(n, int) and 1 <= n <= 8:
                return n
        ver = str(getattr(info, "chip_version", ""))
        if "7" in ver:
            return 2
    except Exception:
        pass
    return 1


def fused_forward_pallas(x_emb, amask_f, pmask_f, wslab):
    """x_emb [B,S,E] f32, amask_f [B,1,S] f32, pmask_f [B,S,1] f32 -> [B,S,128]."""
    B, S, E_ = x_emb.shape

    # Grid width == number of TensorCores; only add more steps when the batch
    # is large enough that per-step tokens would exceed ~2K (pipeline overlap,
    # VMEM budget on v7x's 64 MiB).
    cores = _tensorcores_per_chip()
    nsteps = cores if B % cores == 0 else 1
    while B % (nsteps * 2) == 0 and (B // nsteps) * S > 2048:
        nsteps *= 2
    BB = B // nsteps

    return pl.pallas_call(
        fused_kernel,
        out_shape=jax.ShapeDtypeStruct((B, S, LANE), jnp.float32),
        grid=(nsteps,),
        in_specs=[
            pl.BlockSpec((BB, S, E_), lambda i: (i, 0, 0)),
            pl.BlockSpec((BB, 1, S), lambda i: (i, 0, 0)),
            pl.BlockSpec((BB, S, 1), lambda i: (i, 0, 0)),
            # single merged weight slab, constant index_map -> one DMA, revisited
            pl.BlockSpec((SLAB_ROWS, SLAB_COLS), lambda i: (0, 0)),
        ],
        out_specs=pl.BlockSpec((BB, S, LANE), lambda i: (i, 0, 0)),
        compiler_params=pltpu.CompilerParams(
            dimension_semantics=("parallel",)),
    )(x_emb, amask_f, pmask_f, wslab)


# ----------------------------- parameters ----------------------------------
def init_params(key, cfg):
    ks = iter(jax.random.split(key, 40))

    def lin(fan_in, fan_out, scale=0.05):
        return (jax.random.normal(next(ks), (fan_in, fan_out), jnp.float32) * scale,
                jax.random.normal(next(ks), (1, fan_out), jnp.float32) * 0.01)

    # embeddings (plain-JAX glue; gather has no clean Pallas equivalent at this size)
    tok_emb = jax.random.normal(next(ks), (cfg.vocab_size, E), jnp.float32) * 0.05
    pos_emb = jax.random.normal(next(ks), (cfg.max_seq, E), jnp.float32) * 0.05
    time_proj = jax.random.normal(next(ks), (1, E), jnp.float32) * 0.05

    # encoder layer params
    wq, bq = lin(E, E); wk, bk = lin(E, E); wv, bv = lin(E, E); wo, bo = lin(E, E)
    ln1g = jnp.ones((1, E), jnp.float32); ln1b = jnp.zeros((1, E), jnp.float32)
    w1, b1 = lin(E, FF); w2, b2 = lin(FF, E)
    ln2g = jnp.ones((1, E), jnp.float32); ln2b = jnp.zeros((1, E), jnp.float32)

    # head params
    wsh, bsh = lin(E, E)                              # shared_hidden
    wna1, bna1 = lin(E, H2)                           # next_activity_head[1]
    wna2, bna2 = lin(H2, cfg.num_activities)          # next_activity_head[3]
    woc1, boc1 = lin(cfg.outcome_head_input_dim, H2)  # outcome_head[1]
    woc2, boc2 = lin(H2, cfg.num_outcomes)            # outcome_head[3]

    # time_embedding (dead-code branch in the reference forward)
    w_te, b_te = lin(1, cfg.hidden_dim, scale=0.1)
    te_g = jnp.ones((cfg.hidden_dim,), jnp.float32)
    te_b = jnp.zeros((cfg.hidden_dim,), jnp.float32)

    # ---- pack everything used by the kernel into ONE lane-dense slab ----
    inv = float(E) ** -0.5   # fold 1/sqrt(E) into q projection

    wa = jnp.concatenate([wq * inv, wk, wv, wo, w1, wsh, wna1, woc1], axis=1)
    assert wa.shape == (E, WA_COLS) and WA_COLS == SLAB_COLS

    w2p = jnp.zeros((FF, SLAB_COLS), jnp.float32).at[:, :E].set(w2)

    wna2p = jnp.zeros((H2, LANE), jnp.float32).at[:, :cfg.num_activities].set(wna2)
    woc2p = jnp.zeros((H2, LANE), jnp.float32).at[:, :cfg.num_outcomes].set(woc2)
    wh = jnp.concatenate([wna2p, woc2p], axis=1)      # [H2, 256]

    def row(vec, scale=1.0):
        r = jnp.zeros((1, SLAB_COLS), jnp.float32)
        return r.at[:, :vec.shape[-1]].set(vec.reshape(1, -1) * scale)

    bias = jnp.concatenate([
        row(bq, inv), row(bk), row(bv), row(bo),
        row(ln1g), row(ln1b), row(b1), row(b2),
        row(ln2g), row(ln2b), row(bsh), row(bna1),
        row(bna2), row(boc1), row(boc2),
        jnp.zeros((1, SLAB_COLS), jnp.float32),
    ], axis=0)
    assert bias.shape == (BIAS_ROWS, SLAB_COLS)

    wslab = jnp.concatenate([wa, w2p, wh, bias], axis=0)
    assert wslab.shape == (SLAB_ROWS, SLAB_COLS)

    return dict(tok_emb=tok_emb, pos_emb=pos_emb, time_proj=time_proj,
                wslab=wslab, time_emb=(w_te, b_te, te_g, te_b))


# ----------------------------- forward --------------------------------------
@jax.jit
def multitask_bert_forward(params, input_ids, attention_mask, times):
    cfg = CFG
    B, S = input_ids.shape

    # --- time_embedding branch: computed but unused (matches the reference) ---
    w_te, b_te, te_g, te_b = params["time_emb"]
    time_mask = attention_mask[..., None].astype(jnp.float32)
    time_mask = time_mask * (~jnp.isnan(times)).astype(jnp.float32)[..., None]
    te = times[..., None] @ w_te + b_te
    te = (te - te.mean(-1, keepdims=True)) * lax.rsqrt(
        te.var(-1, keepdims=True) + 1e-5) * te_g + te_b
    te = jnp.maximum(te, 0.0) * time_mask
    _ = te  # unused, exactly as in the PyTorch forward

    # --- embedding glue (gather) for the synthetic PromptedBertModel ---
    x = (params["tok_emb"][input_ids]
         + params["pos_emb"][None, :S, :]
         + times[..., None] * params["time_proj"])          # [B,S,E]

    amask_f = attention_mask.astype(jnp.float32).reshape(B, 1, S)
    pmask_f = (input_ids == 0).astype(jnp.float32).reshape(B, S, 1)

    # --- fused encoder + heads (single Pallas call) ---
    out = fused_forward_pallas(x, amask_f, pmask_f, params["wslab"])
    next_logits = out[:, :S, :cfg.num_activities]                     # [B, S, A]
    outcome_logits = out[:, 0, OUT_LANE0:OUT_LANE0 + cfg.num_outcomes]  # [B, O]
    return next_logits, outcome_logits


# ----------------------------- main -----------------------------------------
if __name__ == "__main__":
    key = jax.random.PRNGKey(0)
    k_param, k_ids, k_time = jax.random.split(key, 3)

    B, S = 2, CFG.max_seq
    params = init_params(k_param, CFG)

    input_ids = jax.random.randint(k_ids, (B, S), 1, CFG.vocab_size, jnp.int32)
    # make the tail of each sequence padding (id 0) to exercise the masking path
    input_ids = input_ids.at[:, -2:].set(0)
    attention_mask = (input_ids != 0).astype(jnp.int32)
    times = jax.random.uniform(k_time, (B, S), jnp.float32)

    next_logits, outcome_logits = multitask_bert_forward(
        params, input_ids, attention_mask, times)
    jax.block_until_ready((next_logits, outcome_logits))

    assert next_logits.shape == (B, S, CFG.num_activities)
    assert outcome_logits.shape == (B, CFG.num_outcomes)
    print("KERNEL_OK")
</pallas_src>

<mosaic_0001>
module attributes {stable_mosaic.version = 11 : i64} {
  func.func @fused_kernel(%arg0: i32, %arg1: memref<2x8x32xf32, #tpu.memory_space<vmem>>, %arg2: memref<2x1x8xf32, #tpu.memory_space<vmem>>, %arg3: memref<2x8x1xf32, #tpu.memory_space<vmem>>, %arg4: memref<128x256xf32, #tpu.memory_space<vmem>>, %arg5: memref<2x8x128xf32, #tpu.memory_space<vmem>>) attributes {dimension_semantics = [#tpu.dimension_semantics<parallel>], iteration_bounds = array<i64: 1>, scalar_prefetch = 0 : i64, scratch_operands = 0 : i64, tpu.core_type = #tpu.core_type<tc>, window_params = [{transform_indices = @transform_0, window_bounds = array<i64: 2, 8, 32>}, {transform_indices = @transform_1, window_bounds = array<i64: 2, 1, 8>}, {transform_indices = @transform_2, window_bounds = array<i64: 2, 8, 1>}, {pipeline_mode = #tpu.pipeline_mode<synchronous>, transform_indices = @transform_3, window_bounds = array<i64: 128, 256>}, {transform_indices = @transform_4, window_bounds = array<i64: 2, 8, 128>}]} {
    %c0 = arith.constant 0 : index
    %c0_0 = arith.constant 0 : index
    %c0_1 = arith.constant 0 : index
    %0 = vector.load %arg1[%c0, %c0_0, %c0_1] : memref<2x8x32xf32, #tpu.memory_space<vmem>>, vector<2x8x32xf32>
    %1 = vector.shape_cast %0 : vector<2x8x32xf32> to vector<16x32xf32>
    %c0_2 = arith.constant 0 : index
    %c0_3 = arith.constant 0 : index
    %c0_4 = arith.constant 0 : index
    %2 = vector.load %arg2[%c0_2, %c0_3, %c0_4] : memref<2x1x8xf32, #tpu.memory_space<vmem>>, vector<2x1x8xf32>
    %c0_5 = arith.constant 0 : index
    %c0_6 = arith.constant 0 : index
    %c0_7 = arith.constant 0 : index
    %3 = vector.load %arg3[%c0_5, %c0_6, %c0_7] : memref<2x8x1xf32, #tpu.memory_space<vmem>>, vector<2x8x1xf32>
    %4 = vector.shape_cast %3 : vector<2x8x1xf32> to vector<16x1xf32>
    %c0_8 = arith.constant 0 : index
    %c0_9 = arith.constant 0 : index
    %5 = vector.load %arg4[%c0_8, %c0_9] : memref<128x256xf32, #tpu.memory_space<vmem>>, vector<32x96xf32>
    %cst = arith.constant dense<0.000000e+00> : vector<16x96xf32>
    %6 = tpu.matmul %1, %5, %cst {dimension_numbers = #tpu.dot_dimension_numbers<[1], [0], [0], [1], [0, 0, 1, 1], [], []>} : vector<16x32xf32>, vector<32x96xf32>, vector<16x96xf32> -> vector<16x96xf32>
    %7 = vector.extract_strided_slice %6 {offsets = [0, 0], sizes = [16, 32], strides = [1, 1]} : vector<16x96xf32> to vector<16x32xf32>
    %c112 = arith.constant 112 : index
    %c0_10 = arith.constant 0 : index
    %8 = vector.load %arg4[%c112, %c0_10] : memref<128x256xf32, #tpu.memory_space<vmem>>, vector<1x32xf32>
    %9 = vector.broadcast %8 : vector<1x32xf32> to vector<16x32xf32>
    %10 = arith.addf %7, %9 : vector<16x32xf32>
    %11 = vector.shape_cast %10 : vector<16x32xf32> to vector<2x8x32xf32>
    %12 = vector.extract_strided_slice %6 {offsets = [0, 32], sizes = [16, 32], strides = [1, 1]} : vector<16x96xf32> to vector<16x32xf32>
    %c113 = arith.constant 113 : index
    %c0_11 = arith.constant 0 : index
    %13 = vector.load %arg4[%c113, %c0_11] : memref<128x256xf32, #tpu.memory_space<vmem>>, vector<1x32xf32>
    %14 = vector.broadcast %13 : vector<1x32xf32> to vector<16x32xf32>
    %15 = arith.addf %12, %14 : vector<16x32xf32>
    %16 = vector.shape_cast %15 : vector<16x32xf32> to vector<2x8x32xf32>
    %17 = vector.extract_strided_slice %6 {offsets = [0, 64], sizes = [16, 32], strides = [1, 1]} : vector<16x96xf32> to vector<16x32xf32>
    %c114 = arith.constant 114 : index
    %c0_12 = arith.constant 0 : index
    %18 = vector.load %arg4[%c114, %c0_12] : memref<128x256xf32, #tpu.memory_space<vmem>>, vector<1x32xf32>
    %19 = vector.broadcast %18 : vector<1x32xf32> to vector<16x32xf32>
    %20 = arith.addf %17, %19 : vector<16x32xf32>
    %21 = vector.shape_cast %20 : vector<16x32xf32> to vector<2x8x32xf32>
    %cst_13 = arith.constant dense<0.000000e+00> : vector<2x8x8xf32>
    %22 = tpu.matmul %11, %16, %cst_13 {dimension_numbers = #tpu.dot_dimension_numbers<[2], [2], [1], [1], [0, 0, 0, 1, 1, 1], [0], [0]>} : vector<2x8x32xf32>, vector<2x8x32xf32>, vector<2x8x8xf32> -> vector<2x8x8xf32>
    %cst_14 = arith.constant 1.000000e+00 : f32
    %23 = vector.broadcast %cst_14 : f32 to vector<2x1x8xf32>
    %24 = arith.subf %2, %23 : vector<2x1x8xf32>
    %cst_15 = arith.constant 1.000000e+09 : f32
    %25 = vector.broadcast %cst_15 : f32 to vector<2x1x8xf32>
    %26 = arith.mulf %24, %25 : vector<2x1x8xf32>
    %27 = vector.broadcast %26 : vector<2x1x8xf32> to vector<2x8x8xf32>
    %28 = arith.addf %22, %27 : vector<2x8x8xf32>
    %cst_16 = arith.constant dense<0xFF800000> : vector<2x8xf32>
    %29 = vector.multi_reduction <maximumf>, %28, %cst_16 [2] : vector<2x8x8xf32> to vector<2x8xf32>
    %30 = vector.shape_cast %29 : vector<2x8xf32> to vector<2x8x1xf32>
    %31 = vector.broadcast %30 : vector<2x8x1xf32> to vector<2x8x8xf32>
    %32 = arith.subf %28, %31 : vector<2x8x8xf32>
    %33 = math.exp %32 : vector<2x8x8xf32>
    %cst_17 = arith.constant dense<0.000000e+00> : vector<2x8xf32>
    %34 = vector.multi_reduction <add>, %33, %cst_17 [2] : vector<2x8x8xf32> to vector<2x8xf32>
    %35 = vector.shape_cast %34 : vector<2x8xf32> to vector<2x8x1xf32>
    %36 = tpu.reciprocal %35 {approx = true} : vector<2x8x1xf32> -> vector<2x8x1xf32>
    %37 = vector.broadcast %36 : vector<2x8x1xf32> to vector<2x8x8xf32>
    %38 = arith.mulf %33, %37 : vector<2x8x8xf32>
    %cst_18 = arith.constant dense<0.000000e+00> : vector<2x8x32xf32>
    %39 = tpu.matmul %38, %21, %cst_18 {dimension_numbers = #tpu.dot_dimension_numbers<[2], [1], [1], [2], [0, 0, 0, 1, 1, 2], [0], [0]>} : vector<2x8x8xf32>, vector<2x8x32xf32>, vector<2x8x32xf32> -> vector<2x8x32xf32>
    %40 = vector.shape_cast %39 : vector<2x8x32xf32> to vector<16x32xf32>
    %c0_19 = arith.constant 0 : index
    %c96 = arith.constant 96 : index
    %41 = vector.load %arg4[%c0_19, %c96] : memref<128x256xf32, #tpu.memory_space<vmem>>, vector<32x32xf32>
    %cst_20 = arith.constant dense<0.000000e+00> : vector<16x32xf32>
    %42 = tpu.matmul %40, %41, %cst_20 {dimension_numbers = #tpu.dot_dimension_numbers<[1], [0], [0], [1], [0, 0, 1, 1], [], []>} : vector<16x32xf32>, vector<32x32xf32>, vector<16x32xf32> -> vector<16x32xf32>
    %c115 = arith.constant 115 : index
    %c0_21 = arith.constant 0 : index
    %43 = vector.load %arg4[%c115, %c0_21] : memref<128x256xf32, #tpu.memory_space<vmem>>, vector<1x32xf32>
    %44 = vector.broadcast %43 : vector<1x32xf32> to vector<16x32xf32>
    %45 = arith.addf %42, %44 : vector<16x32xf32>
    %46 = arith.addf %1, %45 : vector<16x32xf32>
    %c116 = arith.constant 116 : index
    %c0_22 = arith.constant 0 : index
    %47 = vector.load %arg4[%c116, %c0_22] : memref<128x256xf32, #tpu.memory_space<vmem>>, vector<1x32xf32>
    %c117 = arith.constant 117 : index
    %c0_23 = arith.constant 0 : index
    %48 = vector.load %arg4[%c117, %c0_23] : memref<128x256xf32, #tpu.memory_space<vmem>>, vector<1x32xf32>
    %cst_24 = arith.constant dense<0.000000e+00> : vector<16xf32>
    %49 = vector.multi_reduction <add>, %46, %cst_24 [1] : vector<16x32xf32> to vector<16xf32>
    %50 = vector.shape_cast %49 : vector<16xf32> to vector<16x1xf32>
    %cst_25 = arith.constant 3.200000e+01 : f32
    %51 = vector.broadcast %cst_25 : f32 to vector<16x1xf32>
    %52 = arith.divf %50, %51 : vector<16x1xf32>
    %53 = arith.mulf %46, %46 : vector<16x32xf32>
    %cst_26 = arith.constant dense<0.000000e+00> : vector<16xf32>
    %54 = vector.multi_reduction <add>, %53, %cst_26 [1] : vector<16x32xf32> to vector<16xf32>
    %55 = vector.shape_cast %54 : vector<16xf32> to vector<16x1xf32>
    %cst_27 = arith.constant 3.200000e+01 : f32
    %56 = vector.broadcast %cst_27 : f32 to vector<16x1xf32>
    %57 = arith.divf %55, %56 : vector<16x1xf32>
    %58 = arith.mulf %52, %52 : vector<16x1xf32>
    %59 = arith.subf %57, %58 : vector<16x1xf32>
    %cst_28 = arith.constant 0.000000e+00 : f32
    %60 = vector.broadcast %cst_28 : f32 to vector<16x1xf32>
    %61 = arith.maximumf %59, %60 : vector<16x1xf32>
    %62 = vector.broadcast %52 : vector<16x1xf32> to vector<16x32xf32>
    %63 = arith.subf %46, %62 : vector<16x32xf32>
    %cst_29 = arith.constant 9.99999996E-13 : f32
    %64 = vector.broadcast %cst_29 : f32 to vector<16x1xf32>
    %65 = arith.addf %61, %64 : vector<16x1xf32>
    %66 = math.rsqrt %65 : vector<16x1xf32>
    %67 = vector.broadcast %66 : vector<16x1xf32> to vector<16x32xf32>
    %68 = arith.mulf %63, %67 : vector<16x32xf32>
    %69 = vector.broadcast %47 : vector<1x32xf32> to vector<16x32xf32>
    %70 = arith.mulf %68, %69 : vector<16x32xf32>
    %71 = vector.broadcast %48 : vector<1x32xf32> to vector<16x32xf32>
    %72 = arith.addf %70, %71 : vector<16x32xf32>
    %c0_30 = arith.constant 0 : index
    %c128 = arith.constant 128 : index
    %73 = vector.load %arg4[%c0_30, %c128] : memref<128x256xf32, #tpu.memory_space<vmem>>, vector<32x64xf32>
    %cst_31 = arith.constant dense<0.000000e+00> : vector<16x64xf32>
    %74 = tpu.matmul %72, %73, %cst_31 {dimension_numbers = #tpu.dot_dimension_numbers<[1], [0], [0], [1], [0, 0, 1, 1], [], []>} : vector<16x32xf32>, vector<32x64xf32>, vector<16x64xf32> -> vector<16x64xf32>
    %c118 = arith.constant 118 : index
    %c0_32 = arith.constant 0 : index
    %75 = vector.load %arg4[%c118, %c0_32] : memref<128x256xf32, #tpu.memory_space<vmem>>, vector<1x64xf32>
    %76 = vector.broadcast %75 : vector<1x64xf32> to vector<16x64xf32>
    %77 = arith.addf %74, %76 : vector<16x64xf32>
    %cst_33 = arith.constant 0.000000e+00 : f32
    %78 = vector.broadcast %cst_33 : f32 to vector<16x64xf32>
    %79 = arith.maximumf %77, %78 : vector<16x64xf32>
    %c32 = arith.constant 32 : index
    %c0_34 = arith.constant 0 : index
    %80 = vector.load %arg4[%c32, %c0_34] : memref<128x256xf32, #tpu.memory_space<vmem>>, vector<64x32xf32>
    %cst_35 = arith.constant dense<0.000000e+00> : vector<16x32xf32>
    %81 = tpu.matmul %79, %80, %cst_35 {dimension_numbers = #tpu.dot_dimension_numbers<[1], [0], [0], [1], [0, 0, 1, 1], [], []>} : vector<16x64xf32>, vector<64x32xf32>, vector<16x32xf32> -> vector<16x32xf32>
    %c119 = arith.constant 119 : index
    %c0_36 = arith.constant 0 : index
    %82 = vector.load %arg4[%c119, %c0_36] : memref<128x256xf32, #tpu.memory_space<vmem>>, vector<1x32xf32>
    %83 = vector.broadcast %82 : vector<1x32xf32> to vector<16x32xf32>
    %84 = arith.addf %81, %83 : vector<16x32xf32>
    %85 = arith.addf %72, %84 : vector<16x32xf32>
    %c120 = arith.constant 120 : index
    %c0_37 = arith.constant 0 : index
    %86 = vector.load %arg4[%c120, %c0_37] : memref<128x256xf32, #tpu.memory_space<vmem>>, vector<1x32xf32>
    %c121 = arith.constant 121 : index
    %c0_38 = arith.constant 0 : index
    %87 = vector.load %arg4[%c121, %c0_38] : memref<128x256xf32, #tpu.memory_space<vmem>>, vector<1x32xf32>
    %cst_39 = arith.constant dense<0.000000e+00> : vector<16xf32>
    %88 = vector.multi_reduction <add>, %85, %cst_39 [1] : vector<16x32xf32> to vector<16xf32>
    %89 = vector.shape_cast %88 : vector<16xf32> to vector<16x1xf32>
    %cst_40 = arith.constant 3.200000e+01 : f32
    %90 = vector.broadcast %cst_40 : f32 to vector<16x1xf32>
    %91 = arith.divf %89, %90 : vector<16x1xf32>
    %92 = arith.mulf %85, %85 : vector<16x32xf32>
    %cst_41 = arith.constant dense<0.000000e+00> : vector<16xf32>
    %93 = vector.multi_reduction <add>, %92, %cst_41 [1] : vector<16x32xf32> to vector<16xf32>
    %94 = vector.shape_cast %93 : vector<16xf32> to vector<16x1xf32>
    %cst_42 = arith.constant 3.200000e+01 : f32
    %95 = vector.broadcast %cst_42 : f32 to vector<16x1xf32>
    %96 = arith.divf %94, %95 : vector<16x1xf32>
    %97 = arith.mulf %91, %91 : vector<16x1xf32>
    %98 = arith.subf %96, %97 : vector<16x1xf32>
    %cst_43 = arith.constant 0.000000e+00 : f32
    %99 = vector.broadcast %cst_43 : f32 to vector<16x1xf32>
    %100 = arith.maximumf %98, %99 : vector<16x1xf32>
    %101 = vector.broadcast %91 : vector<16x1xf32> to vector<16x32xf32>
    %102 = arith.subf %85, %101 : vector<16x32xf32>
    %cst_44 = arith.constant 9.99999996E-13 : f32
    %103 = vector.broadcast %cst_44 : f32 to vector<16x1xf32>
    %104 = arith.addf %100, %103 : vector<16x1xf32>
    %105 = math.rsqrt %104 : vector<16x1xf32>
    %106 = vector.broadcast %105 : vector<16x1xf32> to vector<16x32xf32>
    %107 = arith.mulf %102, %106 : vector<16x32xf32>
    %108 = vector.broadcast %86 : vector<1x32xf32> to vector<16x32xf32>
    %109 = arith.mulf %107, %108 : vector<16x32xf32>
    %110 = vector.broadcast %87 : vector<1x32xf32> to vector<16x32xf32>
    %111 = arith.addf %109, %110 : vector<16x32xf32>
    %c0_45 = arith.constant 0 : index
    %c224 = arith.constant 224 : index
    %112 = vector.load %arg4[%c0_45, %c224] : memref<128x256xf32, #tpu.memory_space<vmem>>, vector<32x16xf32>
    %cst_46 = arith.constant dense<0.000000e+00> : vector<16x16xf32>
    %113 = tpu.matmul %111, %112, %cst_46 {dimension_numbers = #tpu.dot_dimension_numbers<[1], [0], [0], [1], [0, 0, 1, 1], [], []>} : vector<16x32xf32>, vector<32x16xf32>, vector<16x16xf32> -> vector<16x16xf32>
    %c123 = arith.constant 123 : index
    %c0_47 = arith.constant 0 : index
    %114 = vector.load %arg4[%c123, %c0_47] : memref<128x256xf32, #tpu.memory_space<vmem>>, vector<1x16xf32>
    %115 = vector.broadcast %114 : vector<1x16xf32> to vector<16x16xf32>
    %116 = arith.addf %113, %115 : vector<16x16xf32>
    %cst_48 = arith.constant 0.000000e+00 : f32
    %117 = vector.broadcast %cst_48 : f32 to vector<16x16xf32>
    %118 = arith.maximumf %116, %117 : vector<16x16xf32>
    %c96_49 = arith.constant 96 : index
    %c0_50 = arith.constant 0 : index
    %119 = vector.load %arg4[%c96_49, %c0_50] : memref<128x256xf32, #tpu.memory_space<vmem>>, vector<16x128xf32>
    %cst_51 = arith.constant dense<0.000000e+00> : vector<16x128xf32>
    %120 = tpu.matmul %118, %119, %cst_51 {dimension_numbers = #tpu.dot_dimension_numbers<[1], [0], [0], [1], [0, 0, 1, 1], [], []>} : vector<16x16xf32>, vector<16x128xf32>, vector<16x128xf32> -> vector<16x128xf32>
    %c124 = arith.constant 124 : index
    %c0_52 = arith.constant 0 : index
    %121 = vector.load %arg4[%c124, %c0_52] : memref<128x256xf32, #tpu.memory_space<vmem>>, vector<1x128xf32>
    %122 = vector.broadcast %121 : vector<1x128xf32> to vector<16x128xf32>
    %123 = arith.addf %120, %122 : vector<16x128xf32>
    %cst_53 = arith.constant 5.000000e-01 : f32
    %124 = vector.broadcast %cst_53 : f32 to vector<16x1xf32>
    %125 = arith.cmpf ogt, %4, %124 : vector<16x1xf32>
    %126 = tpu.iota {dimensions = array<i32: 1>} : vector<16x128xi32>
    %c0_i32 = arith.constant 0 : i32
    %127 = vector.broadcast %c0_i32 : i32 to vector<16x128xi32>
    %128 = arith.cmpi eq, %126, %127 : vector<16x128xi32>
    %cst_54 = arith.constant 0xFF800000 : f32
    %129 = vector.shape_cast %125 : vector<16x1xi1> to vector<16x1xi1>
    %130 = vector.broadcast %129 : vector<16x1xi1> to vector<16x128xi1>
    %131 = vector.broadcast %cst_54 : f32 to vector<16x128xf32>
    %132 = arith.select %130, %131, %123 : vector<16x128xi1>, vector<16x128xf32>
    %133 = vector.broadcast %125 : vector<16x1xi1> to vector<16x128xi1>
    %134 = arith.andi %133, %128 : vector<16x128xi1>
    %cst_55 = arith.constant 0x7F800000 : f32
    %135 = vector.broadcast %cst_55 : f32 to vector<16x128xf32>
    %136 = arith.select %134, %135, %132 : vector<16x128xi1>, vector<16x128xf32>
    %137 = vector.shape_cast %111 : vector<16x32xf32> to vector<2x8x32xf32>
    %cst_56 = arith.constant dense<0.000000e+00> : vector<2x1x32xf32>
    %138 = tpu.matmul %2, %137, %cst_56 {dimension_numbers = #tpu.dot_dimension_numbers<[2], [1], [1], [2], [0, 0, 0, 1, 1, 2], [0], [0]>} : vector<2x1x8xf32>, vector<2x8x32xf32>, vector<2x1x32xf32> -> vector<2x1x32xf32>
    %cst_57 = arith.constant dense<0.000000e+00> : vector<2x1xf32>
    %139 = vector.multi_reduction <add>, %2, %cst_57 [2] : vector<2x1x8xf32> to vector<2x1xf32>
    %140 = vector.shape_cast %139 : vector<2x1xf32> to vector<2x1x1xf32>
    %cst_58 = arith.constant 9.99999971E-10 : f32
    %141 = vector.broadcast %cst_58 : f32 to vector<2x1x1xf32>
    %142 = arith.maximumf %140, %141 : vector<2x1x1xf32>
    %143 = tpu.reciprocal %142 {approx = true} : vector<2x1x1xf32> -> vector<2x1x1xf32>
    %144 = vector.broadcast %143 : vector<2x1x1xf32> to vector<2x1x32xf32>
    %145 = arith.mulf %138, %144 : vector<2x1x32xf32>
    %146 = vector.shape_cast %145 : vector<2x1x32xf32> to vector<2x32xf32>
    %c0_59 = arith.constant 0 : index
    %c192 = arith.constant 192 : index
    %147 = vector.load %arg4[%c0_59, %c192] : memref<128x256xf32, #tpu.memory_space<vmem>>, vector<32x32xf32>
    %cst_60 = arith.constant dense<0.000000e+00> : vector<2x32xf32>
    %148 = tpu.matmul %146, %147, %cst_60 {dimension_numbers = #tpu.dot_dimension_numbers<[1], [0], [0], [1], [0, 0, 1, 1], [], []>} : vector<2x32xf32>, vector<32x32xf32>, vector<2x32xf32> -> vector<2x32xf32>
    %c122 = arith.constant 122 : index
    %c0_61 = arith.constant 0 : index
    %149 = vector.load %arg4[%c122, %c0_61] : memref<128x256xf32, #tpu.memory_space<vmem>>, vector<1x32xf32>
    %150 = vector.broadcast %149 : vector<1x32xf32> to vector<2x32xf32>
    %151 = arith.addf %148, %150 : vector<2x32xf32>
    %cst_62 = arith.constant 0.000000e+00 : f32
    %152 = vector.broadcast %cst_62 : f32 to vector<2x32xf32>
    %153 = arith.maximumf %151, %152 : vector<2x32xf32>
    %c0_63 = arith.constant 0 : index
    %c240 = arith.constant 240 : index
    %154 = vector.load %arg4[%c0_63, %c240] : memref<128x256xf32, #tpu.memory_space<vmem>>, vector<32x16xf32>
    %cst_64 = arith.constant dense<0.000000e+00> : vector<2x16xf32>
    %155 = tpu.matmul %153, %154, %cst_64 {dimension_numbers = #tpu.dot_dimension_numbers<[1], [0], [0], [1], [0, 0, 1, 1], [], []>} : vector<2x32xf32>, vector<32x16xf32>, vector<2x16xf32> -> vector<2x16xf32>
    %c125 = arith.constant 125 : index
    %c0_65 = arith.constant 0 : index
    %156 = vector.load %arg4[%c125, %c0_65] : memref<128x256xf32, #tpu.memory_space<vmem>>, vector<1x16xf32>
    %157 = vector.broadcast %156 : vector<1x16xf32> to vector<2x16xf32>
    %158 = arith.addf %155, %157 : vector<2x16xf32>
    %cst_66 = arith.constant 0.000000e+00 : f32
    %159 = vector.broadcast %cst_66 : f32 to vector<2x16xf32>
    %160 = arith.maximumf %158, %159 : vector<2x16xf32>
    %c96_67 = arith.constant 96 : index
    %c128_68 = arith.constant 128 : index
    %161 = vector.load %arg4[%c96_67, %c128_68] : memref<128x256xf32, #tpu.memory_space<vmem>>, vector<16x128xf32>
    %cst_69 = arith.constant dense<0.000000e+00> : vector<2x128xf32>
    %162 = tpu.matmul %160, %161, %cst_69 {dimension_numbers = #tpu.dot_dimension_numbers<[1], [0], [0], [1], [0, 0, 1, 1], [], []>} : vector<2x16xf32>, vector<16x128xf32>, vector<2x128xf32> -> vector<2x128xf32>
    %c126 = arith.constant 126 : index
    %c0_70 = arith.constant 0 : index
    %163 = vector.load %arg4[%c126, %c0_70] : memref<128x256xf32, #tpu.memory_space<vmem>>, vector<1x128xf32>
    %164 = vector.broadcast %163 : vector<1x128xf32> to vector<2x128xf32>
    %165 = arith.addf %162, %164 : vector<2x128xf32>
    %166 = vector.shape_cast %136 : vector<16x128xf32> to vector<2x8x128xf32>
    %c0_71 = arith.constant 0 : index
    %c0_72 = arith.constant 0 : index
    %c0_73 = arith.constant 0 : index
    %167 = vector.load %arg5[%c0_71, %c0_72, %c0_73] : memref<2x8x128xf32, #tpu.memory_space<vmem>>, vector<2x8x128xf32>
    tpu.vector_store %arg5[%c0_71, %c0_72, %c0_73], %166 {strides = array<i32>} : memref<2x8x128xf32, #tpu.memory_space<vmem>>, vector<2x8x128xf32>,
    %168 = vector.extract_strided_slice %165 {offsets = [0, 0], sizes = [2, 64], strides = [1, 1]} : vector<2x128xf32> to vector<2x64xf32>
    %169 = vector.shape_cast %168 : vector<2x64xf32> to vector<2x1x64xf32>
    %c0_74 = arith.constant 0 : index
    %c0_75 = arith.constant 0 : index
    %c64 = arith.constant 64 : index
    %170 = vector.load %arg5[%c0_74, %c0_75, %c64] : memref<2x8x128xf32, #tpu.memory_space<vmem>>, vector<2x1x64xf32>
    tpu.vector_store %arg5[%c0_74, %c0_75, %c64], %169 {strides = array<i32>} : memref<2x8x128xf32, #tpu.memory_space<vmem>>, vector<2x1x64xf32>,
    return
  }
  func.func @transform_0(%arg0: i32) -> (i32, i32, i32) {
    %c0_i32 = arith.constant 0 : i32
    %c0_i32_0 = arith.constant 0 : i32
    %c0_i32_1 = arith.constant 0 : i32
    return %arg0, %c0_i32, %c0_i32_0 : i32, i32, i32
  }
  func.func @transform_1(%arg0: i32) -> (i32, i32, i32) {
    %c0_i32 = arith.constant 0 : i32
    %c0_i32_0 = arith.constant 0 : i32
    %c0_i32_1 = arith.constant 0 : i32
    return %arg0, %c0_i32, %c0_i32_0 : i32, i32, i32
  }
  func.func @transform_2(%arg0: i32) -> (i32, i32, i32) {
    %c0_i32 = arith.constant 0 : i32
    %c0_i32_0 = arith.constant 0 : i32
    %c0_i32_1 = arith.constant 0 : i32
    return %arg0, %c0_i32, %c0_i32_0 : i32, i32, i32
  }
  func.func @transform_3(%arg0: i32) -> (i32, i32) {
    %c0_i32 = arith.constant 0 : i32
    %c0_i32_0 = arith.constant 0 : i32
    %c0_i32_1 = arith.constant 0 : i32
    return %c0_i32, %c0_i32_0 : i32, i32
  }
  func.func @transform_4(%arg0: i32) -> (i32, i32, i32) {
    %c0_i32 = arith.constant 0 : i32
    %c0_i32_0 = arith.constant 0 : i32
    %c0_i32_1 = arith.constant 0 : i32
    return %arg0, %c0_i32, %c0_i32_0 : i32, i32, i32
  }
}

</mosaic_0001>

<llo_original>
// kernel: multitask_bert_forward.1
$region0: #{multitask_bert_forward.1}
  #allocation0 [shape = 'u32[]', space=smem, size = 0x4, offset = 0x4, fixed_abs, tag = 'smem constant byte address 0x4 - core index']
  #allocation1 [shape = 'u32[144,128]{1,0:T(1,128)}', space=vmem, size = 0x12000, scoped, tag = 'internal scratch']
  %s0 = inlined_call_operand.vmem [shape: f32[2,8,32], index: 0, kind: input, shape index: {}]
  %s1 = inlined_call_operand.vmem [shape: f32[2,1,8], index: 1, kind: input, shape index: {}]
  %s2 = inlined_call_operand.vmem [shape: f32[2,8,1], index: 2, kind: input, shape index: {}]
  %s3 = inlined_call_operand.hbm [shape: f32[128,256], index: 3, kind: input, shape index: {}]
  %s4 = inlined_call_operand.vmem [shape: f32[2,8,128], index: 4, kind: output, shape index: {}]
  %s5 = sld [smem:[#allocation0]]
  $region30: #{multitask_bert_forward.1} parent=0
    _
  %s7 = ssub.s32 1, %s5
  %s8 = scalar_select 0, %s7, %s5
  $region1: #{multitask_bert_forward.1} parent=0
    #allocation2 [shape = 'u8[131072]{0}', space=vmem, size = 0x20000, scoped, tag = 'input window, operand 3, single buffered']
    #allocation3 [shape = 's32[1]{0}', space=sflag, size = 0x4, scoped, tag = 'scoped memory for multitask_bert_forward.1']
    %9 = vsyncpa [#allocation3], 0
    // Predicated region
    $region2: #{multitask_bert_forward.1} parent=1 // pred_check
      _
    $region3: #{multitask_bert_forward.1} parent=1 // pred_check_branch
      %11 = sbr.rel (0) target = $region5
    $region4: #{multitask_bert_forward.1} parent=1 // pred_region
      _
    $region5: #{multitask_bert_forward.1} parent=1 // pred_fallthru
      _
    // Predicated region
    $region6: #{multitask_bert_forward.1} parent=1 // pred_check
      _
    $region7: #{multitask_bert_forward.1} parent=1 // pred_check_branch
      %13 = sbr.rel (0) target = $region9
    $region8: #{multitask_bert_forward.1} parent=1 // pred_region
      _
    $region9: #{multitask_bert_forward.1} parent=1 // pred_fallthru
      _
    // Predicated region
    $region10: #{multitask_bert_forward.1} parent=1 // pred_check
      _
    $region11: #{multitask_bert_forward.1} parent=1 // pred_check_branch
      %15 = sbr.rel (0) target = $region13
    $region12: #{multitask_bert_forward.1} parent=1 // pred_region
      _
    $region13: #{multitask_bert_forward.1} parent=1 // pred_fallthru
      _
    // Predicated region
    $region14: #{multitask_bert_forward.1} parent=1 // pred_check
      _
    $region15: #{multitask_bert_forward.1} parent=1 // pred_check_branch
      %17 = sbr.rel (0) target = $region17
    $region16: #{multitask_bert_forward.1} parent=1 // pred_region
      %s19 = ssub.s32 4096, 4096
      %20 = vsyncadd [#allocation3], %s19
      %s21 = sshll.u32 [#allocation2], 4
      %s22 = int_to_ptr.vmem [resolvable:$true] %s21
      %27 = dma.hbm_to_vmem [thread:$0]  %s3, 4096, %s22, [#allocation3], 256, 256, 16
    $region17: #{multitask_bert_forward.1} parent=1 // pred_fallthru
      _
    // Predicated region
    $region18: #{multitask_bert_forward.1} parent=1 // pred_check
      _
    $region19: #{multitask_bert_forward.1} parent=1 // pred_check_branch
      %29 = sbr.rel (0) target = $region21
    $region20: #{multitask_bert_forward.1} parent=1 // pred_region
      %30 = dma.done [#allocation3], 4096
    $region21: #{multitask_bert_forward.1} parent=1 // pred_fallthru
      _
    %v31 = vld [vmem:[%s0] sm:$0xff]
    %v32 = vld [vmem:[%s0 + $0x8] sm:$0xff]
    %v33 = vld [vmem:[%s1] sm:$0x1]
    %v34 = vld [vmem:[%s1 + $0x1] sm:$0x1]
    %v35 = vld [vmem:[%s2] sm:$0xff]
    %v36 = vld [vmem:[%s2 + $0x8] sm:$0xff]
    %v37 = vld [vmem:[#allocation2] sm:$0xff]
    %v38 = vld [vmem:[#allocation2 + $0x10] sm:$0xff]
    %v39 = vld [vmem:[#allocation2 + $0x20] sm:$0xff]
    %v40 = vld [vmem:[#allocation2 + $0x30] sm:$0xff]
    %vm41 = vcmask 261120
    %v43 = vsel %vm41, %v31, 0
    %v46 = vsel %vm41, %v32, 0
    %48 = vmatprep.subr.mxu0 0.0
    %49 = vmatpush1.msra.mxu0 %v37
    %50 = vmatprep.subr.mxu0 0.0
    %51 = vmatpush1.msra.mxu0 %v38
    %52 = vmatprep.subr.mxu0 0.0
    %53 = vmatpush1.msra.mxu0 %v39
    %54 = vmatprep.subr.mxu0 0.0
    %55 = vmatpush1.msra.mxu0 %v40
    %56 = vmatprep.subr.mxu0 0.0
    %57 = vmatpush1.msra.mxu0 0.0
    %58 = vmatprep.subr.mxu0 0.0
    %59 = vmatpush1.msra.mxu0 0.0
    %60 = vmatprep.subr.mxu0 0.0
    %61 = vmatpush1.msra.mxu0 0.0
    %62 = vmatprep.subr.mxu0 0.0
    %63 = vmatpush1.msra.mxu0 0.0
    %64 = vmatprep.subr.mxu0 0.0
    %65 = vmatpush1.msra.mxu0 0.0
    %66 = vmatprep.subr.mxu0 0.0
    %67 = vmatpush1.msra.mxu0 0.0
    %68 = vmatprep.subr.mxu0 0.0
    %69 = vmatpush1.msra.mxu0 0.0
    %70 = vmatprep.subr.mxu0 0.0
    %71 = vmatpush1.msra.mxu0 0.0
    %72 = vmatprep.subr.mxu0 0.0
    %73 = vmatpush1.msra.mxu0 0.0
    %74 = vmatprep.subr.mxu0 0.0
    %75 = vmatpush1.msra.mxu0 0.0
    %76 = vmatprep.subr.mxu0 0.0
    %77 = vmatpush1.msra.mxu0 0.0
    %78 = vmatprep.subr.mxu0 0.0
    %79 = vmatpush1.msra.mxu0 0.0
    %80 = vmatprep.subr.mxu0 0.0
    %81 = vmatpush1.msra.mxu0 0.0
    %82 = vmatprep.subr.mxu0 0.0
    %83 = vmatpush1.msra.mxu0 0.0
    %84 = vmatprep.subr.mxu0 0.0
    %85 = vmatpush1.msra.mxu0 0.0
    %86 = vmatprep.subr.mxu0 0.0
    %87 = vmatpush1.msra.mxu0 0.0
    %88 = vmatprep.subr.mxu0 0.0
    %89 = vmatpush1.msra.mxu0 0.0
    %90 = vmatprep.subr.mxu0 0.0
    %91 = vmatpush1.msra.mxu0 0.0
    %92 = vmatprep.subr.mxu0 0.0
    %93 = vmatpush1.msra.mxu0 0.0
    %94 = vmatprep.subr.mxu0 0.0
    %95 = vmatpush1.msra.mxu0 0.0
    %96 = vmatprep.subr.mxu0 0.0
    %97 = vmatpush1.msra.mxu0 0.0
    %98 = vmatprep.subr.mxu0 0.0
    %99 = vmatpush1.msra.mxu0 0.0
    %100 = vmatprep.subr.mxu0 0.0
    %101 = vmatpush1.msra.mxu0 0.0
    %102 = vmatprep.subr.mxu0 0.0
    %103 = vmatpush1.msra.mxu0 0.0
    %104 = vmatprep.subr.mxu0 0.0
    %105 = vmatpush1.msra.mxu0 0.0
    %106 = vmatprep.subr.mxu0 0.0
    %107 = vmatpush1.msra.mxu0 0.0
    %108 = vmatprep.subr.mxu0 0.0
    %109 = vmatpush1.msra.mxu0 0.0
    %110 = vmatprep.subr.mxu0 0.0
    %111 = vmatpush1.msra.mxu0 0.0
    %112 = vmatprep.mubr.f32.mxu0 0.0
    %113 = vmatmul.mubr.f32.gmra.mrb[0].mxu0 %v43
    %v114 = vpop.f32.mrb[0].mxu0
    %v115 = vadd.f32 0.0, %v114
    %v116 = vpop.f32.mrb[0].mxu0
    %117 = vmatprep.mubr.f32.mxu0 0.0
    %118 = vmatmul.mubr.f32.gmra.mrb[0].mxu0 %v46
    %v119 = vpop.f32.mrb[0].mxu0
    %v120 = vadd.f32 0.0, %v119
    %v121 = vpop.f32.mrb[0].mxu0
    %122 = vdwg.mxu0
    %v123 = vld [vmem:[#allocation2 + $0xe0] ss:$0 sm:$0xff]
    %v124 = vadd.f32 %v115, %v123
    %v125 = vadd.f32 %v120, %v123
    %v126 = vld [vmem:[#allocation2 + $0xe1] ss:$0 sm:$0xff]
    %128 = vrot.lane.b32.xlu0 %v126, 32
    %v129 = vpop.permute.xlu0 %128
    %v131 = vadd.f32 %v115, %v129
    %v132 = vadd.f32 %v120, %v129
    %v133 = vld [vmem:[#allocation2 + $0xe2] ss:$0 sm:$0xff]
    %135 = vrot.lane.b32.xlu0 %v133, 64
    %v136 = vpop.permute.xlu0 %135
    %v138 = vadd.f32 %v115, %v136
    %v139 = vadd.f32 %v120, %v136
    %v140 = vsub.f32 %v33, 1.0
    %v141 = vsub.f32 %v34, 1.0
    %v142 = vmul.f32 %v140, 1e+09
    %v143 = vmul.f32 %v141, 1e+09
    %v146 = vlaneseq
    %v147 = vshrl.u32 %v146, 7
    %v148 = vsub.s32 0, %v147
    %v149 = vrot.slane %v142, %v148
    %v150 = vlaneseq
    %v151 = vshrl.u32 %v150, 7
    %v152 = vsub.s32 0, %v151
    %v153 = vrot.slane %v143, %v152
    %157 = vrot.lane.b32.xlu0 %v131, 96
    %v158 = vpop.permute.xlu0 %157
    %v160 = vsel %vm41, %v124, 0
    %v162 = vsel %vm41, %v158, 0
    %164 = vmatprep.subr.mxu0 0.0
    %165 = vmatpush1.xpose.msra.mxu0 %v162
    %166 = vmatprep.subr.mxu0 0.0
    %167 = vmatpush1.xpose.msra.mxu0 0.0
    %168 = vmatprep.subr.mxu0 0.0
    %169 = vmatpush1.xpose.msra.mxu0 0.0
    %170 = vmatprep.subr.mxu0 0.0
    %171 = vmatpush1.xpose.msra.mxu0 0.0
    %172 = vmatprep.subr.mxu0 0.0
    %173 = vmatpush1.xpose.msra.mxu0 0.0
    %174 = vmatprep.subr.mxu0 0.0
    %175 = vmatpush1.xpose.msra.mxu0 0.0
    %176 = vmatprep.subr.mxu0 0.0
    %177 = vmatpush1.xpose.msra.mxu0 0.0
    %178 = vmatprep.subr.mxu0 0.0
    %179 = vmatpush1.xpose.msra.mxu0 0.0
    %180 = vmatprep.subr.mxu0 0.0
    %181 = vmatpush1.xpose.msra.mxu0 0.0
    %182 = vmatprep.subr.mxu0 0.0
    %183 = vmatpush1.xpose.msra.mxu0 0.0
    %184 = vmatprep.subr.mxu0 0.0
    %185 = vmatpush1.xpose.msra.mxu0 0.0
    %186 = vmatprep.subr.mxu0 0.0
    %187 = vmatpush1.xpose.msra.mxu0 0.0
    %188 = vmatprep.subr.mxu0 0.0
    %189 = vmatpush1.xpose.msra.mxu0 0.0
    %190 = vmatprep.subr.mxu0 0.0
    %191 = vmatpush1.xpose.msra.mxu0 0.0
    %192 = vmatprep.subr.mxu0 0.0
    %193 = vmatpush1.xpose.msra.mxu0 0.0
    %194 = vmatprep.subr.mxu0 0.0
    %195 = vmatpush1.xpose.msra.mxu0 0.0
    %196 = vmatprep.subr.mxu0 0.0
    %197 = vmatpush1.xpose.msra.mxu0 0.0
    %198 = vmatprep.subr.mxu0 0.0
    %199 = vmatpush1.xpose.msra.mxu0 0.0
    %200 = vmatprep.subr.mxu0 0.0
    %201 = vmatpush1.xpose.msra.mxu0 0.0
    %202 = vmatprep.subr.mxu0 0.0
    %203 = vmatpush1.xpose.msra.mxu0 0.0
    %204 = vmatprep.subr.mxu0 0.0
    %205 = vmatpush1.xpose.msra.mxu0 0.0
    %206 = vmatprep.subr.mxu0 0.0
    %207 = vmatpush1.xpose.msra.mxu0 0.0
    %208 = vmatprep.subr.mxu0 0.0
    %209 = vmatpush1.xpose.msra.mxu0 0.0
    %210 = vmatprep.subr.mxu0 0.0
    %211 = vmatpush1.xpose.msra.mxu0 0.0
    %212 = vmatprep.subr.mxu0 0.0
    %213 = vmatpush1.xpose.msra.mxu0 0.0
    %214 = vmatprep.subr.mxu0 0.0
    %215 = vmatpush1.xpose.msra.mxu0 0.0
    %216 = vmatprep.subr.mxu0 0.0
    %217 = vmatpush1.xpose.msra.mxu0 0.0
    %218 = vmatprep.subr.mxu0 0.0
    %219 = vmatpush1.xpose.msra.mxu0 0.0
    %220 = vmatprep.subr.mxu0 0.0
    %221 = vmatpush1.xpose.msra.mxu0 0.0
    %222 = vmatprep.subr.mxu0 0.0
    %223 = vmatpush1.xpose.msra.mxu0 0.0
    %224 = vmatprep.subr.mxu0 0.0
    %225 = vmatpush1.xpose.msra.mxu0 0.0
    %226 = vmatprep.subr.mxu0 0.0
    %227 = vmatpush1.xpose.msra.mxu0 0.0
    %228 = vmatprep.mubr.f32.mxu0 0.0
    %229 = vmatmul.mubr.f32.gmra.mrb[0].mxu0 %v160
    %v230 = vpop.f32.mrb[0].mxu0
    %v231 = vadd.f32 %v149, %v230
    %v232 = vpop.f32.mrb[0].mxu0
    %233 = vdwg.mxu0
    %235 = vrot.lane.b32.xlu0 %v132, 96
    %v236 = vpop.permute.xlu0 %235
    %v238 = vsel %vm41, %v125, 0
    %v240 = vsel %vm41, %v236, 0
    %242 = vmatprep.subr.mxu0 0.0
    %243 = vmatpush1.xpose.msra.mxu0 %v240
    %244 = vmatprep.subr.mxu0 0.0
    %245 = vmatpush1.xpose.msra.mxu0 0.0
    %246 = vmatprep.subr.mxu0 0.0
    %247 = vmatpush1.xpose.msra.mxu0 0.0
    %248 = vmatprep.subr.mxu0 0.0
    %249 = vmatpush1.xpose.msra.mxu0 0.0
    %250 = vmatprep.subr.mxu0 0.0
    %251 = vmatpush1.xpose.msra.mxu0 0.0
    %252 = vmatprep.subr.mxu0 0.0
    %253 = vmatpush1.xpose.msra.mxu0 0.0
    %254 = vmatprep.subr.mxu0 0.0
    %255 = vmatpush1.xpose.msra.mxu0 0.0
    %256 = vmatprep.subr.mxu0 0.0
    %257 = vmatpush1.xpose.msra.mxu0 0.0
    %258 = vmatprep.subr.mxu0 0.0
    %259 = vmatpush1.xpose.msra.mxu0 0.0
    %260 = vmatprep.subr.mxu0 0.0
    %261 = vmatpush1.xpose.msra.mxu0 0.0
    %262 = vmatprep.subr.mxu0 0.0
    %263 = vmatpush1.xpose.msra.mxu0 0.0
    %264 = vmatprep.subr.mxu0 0.0
    %265 = vmatpush1.xpose.msra.mxu0 0.0
    %266 = vmatprep.subr.mxu0 0.0
    %267 = vmatpush1.xpose.msra.mxu0 0.0
    %268 = vmatprep.subr.mxu0 0.0
    %269 = vmatpush1.xpose.msra.mxu0 0.0
    %270 = vmatprep.subr.mxu0 0.0
    %271 = vmatpush1.xpose.msra.mxu0 0.0
    %272 = vmatprep.subr.mxu0 0.0
    %273 = vmatpush1.xpose.msra.mxu0 0.0
    %274 = vmatprep.subr.mxu0 0.0
    %275 = vmatpush1.xpose.msra.mxu0 0.0
    %276 = vmatprep.subr.mxu0 0.0
    %277 = vmatpush1.xpose.msra.mxu0 0.0
    %278 = vmatprep.subr.mxu0 0.0
    %279 = vmatpush1.xpose.msra.mxu0 0.0
    %280 = vmatprep.subr.mxu0 0.0
    %281 = vmatpush1.xpose.msra.mxu0 0.0
    %282 = vmatprep.subr.mxu0 0.0
    %283 = vmatpush1.xpose.msra.mxu0 0.0
    %284 = vmatprep.subr.mxu0 0.0
    %285 = vmatpush1.xpose.msra.mxu0 0.0
    %286 = vmatprep.subr.mxu0 0.0
    %287 = vmatpush1.xpose.msra.mxu0 0.0
    %288 = vmatprep.subr.mxu0 0.0
    %289 = vmatpush1.xpose.msra.mxu0 0.0
    %290 = vmatprep.subr.mxu0 0.0
    %291 = vmatpush1.xpose.msra.mxu0 0.0
    %292 = vmatprep.subr.mxu0 0.0
    %293 = vmatpush1.xpose.msra.mxu0 0.0
    %294 = vmatprep.subr.mxu0 0.0
    %295 = vmatpush1.xpose.msra.mxu0 0.0
    %296 = vmatprep.subr.mxu0 0.0
    %297 = vmatpush1.xpose.msra.mxu0 0.0
    %298 = vmatprep.subr.mxu0 0.0
    %299 = vmatpush1.xpose.msra.mxu0 0.0
    %300 = vmatprep.subr.mxu0 0.0
    %301 = vmatpush1.xpose.msra.mxu0 0.0
    %302 = vmatprep.subr.mxu0 0.0
    %303 = vmatpush1.xpose.msra.mxu0 0.0
    %304 = vmatprep.subr.mxu0 0.0
    %305 = vmatpush1.xpose.msra.mxu0 0.0
    %306 = vmatprep.mubr.f32.mxu0 0.0
    %307 = vmatmul.mubr.f32.gmra.mrb[0].mxu0 %v238
    %v308 = vpop.f32.mrb[0].mxu0
    %v309 = vadd.f32 %v153, %v308
    %v310 = vpop.f32.mrb[0].mxu0
    %311 = vdwg.mxu0
    %vm312 = vcmask 64512
    %v313 = vsel %vm312, %v231, -inf
    %314 = vmax.xlane.f32.xlu0 %v313
    %v315 = vpop.xlane.xlu0 %314
    %v316 = vsel %vm312, %v309, -inf
    %317 = vmax.xlane.f32.xlu0 %v316
    %v318 = vpop.xlane.xlu0 %317
    %v319 = vsub.f32 %v231, %v315
    %v320 = vsub.f32 %v309, %v318
    %v321 = vmul.f32 %v319, 1.442695
    %v322 = vpow.pop %v321
    %v323 = vmul.f32 %v320, 1.442695
    %v324 = vpow.pop %v323
    %v325 = vsel %vm312, %v322, 0.0
    %326 = vadd.xlane.f32.xlu0 %v325
    %v327 = vpop.xlane.xlu0 %326
    %v328 = vsel %vm312, %v324, 0.0
    %329 = vadd.xlane.f32.xlu0 %v328
    %v330 = vpop.xlane.xlu0 %329
    %v331 = vrcp.pop %v327
    %v332 = vrcp.pop %v330
    %v333 = vmul.f32 %v322, %v331
    %v334 = vmul.f32 %v324, %v332
    %336 = vrot.lane.b32.xlu0 %v138, 64
    %v337 = vpop.permute.xlu0 %336
    %v340 = vsel %vm312, %v333, 0
    %342 = vmatprep.subr.mxu0 0.0
    %343 = vmatpush1.msra.mxu0 %v337
    %344 = vmatprep.subr.mxu0 0.0
    %345 = vmatpush1.msra.mxu0 0.0
    %346 = vmatprep.subr.mxu0 0.0
    %347 = vmatpush1.msra.mxu0 0.0
    %348 = vmatprep.subr.mxu0 0.0
    %349 = vmatpush1.msra.mxu0 0.0
    %350 = vmatprep.subr.mxu0 0.0
    %351 = vmatpush1.msra.mxu0 0.0
    %352 = vmatprep.subr.mxu0 0.0
    %353 = vmatpush1.msra.mxu0 0.0
    %354 = vmatprep.subr.mxu0 0.0
    %355 = vmatpush1.msra.mxu0 0.0
    %356 = vmatprep.subr.mxu0 0.0
    %357 = vmatpush1.msra.mxu0 0.0
    %358 = vmatprep.subr.mxu0 0.0
    %359 = vmatpush1.msra.mxu0 0.0
    %360 = vmatprep.subr.mxu0 0.0
    %361 = vmatpush1.msra.mxu0 0.0
    %362 = vmatprep.subr.mxu0 0.0
    %363 = vmatpush1.msra.mxu0 0.0
    %364 = vmatprep.subr.mxu0 0.0
    %365 = vmatpush1.msra.mxu0 0.0
    %366 = vmatprep.subr.mxu0 0.0
    %367 = vmatpush1.msra.mxu0 0.0
    %368 = vmatprep.subr.mxu0 0.0
    %369 = vmatpush1.msra.mxu0 0.0
    %370 = vmatprep.subr.mxu0 0.0
    %371 = vmatpush1.msra.mxu0 0.0
    %372 = vmatprep.subr.mxu0 0.0
    %373 = vmatpush1.msra.mxu0 0.0
    %374 = vmatprep.subr.mxu0 0.0
    %375 = vmatpush1.msra.mxu0 0.0
    %376 = vmatprep.subr.mxu0 0.0
    %377 = vmatpush1.msra.mxu0 0.0
    %378 = vmatprep.subr.mxu0 0.0
    %379 = vmatpush1.msra.mxu0 0.0
    %380 = vmatprep.subr.mxu0 0.0
    %381 = vmatpush1.msra.mxu0 0.0
    %382 = vmatprep.subr.mxu0 0.0
    %383 = vmatpush1.msra.mxu0 0.0
    %384 = vmatprep.subr.mxu0 0.0
    %385 = vmatpush1.msra.mxu0 0.0
    %386 = vmatprep.subr.mxu0 0.0
    %387 = vmatpush1.msra.mxu0 0.0
    %388 = vmatprep.subr.mxu0 0.0
    %389 = vmatpush1.msra.mxu0 0.0
    %390 = vmatprep.subr.mxu0 0.0
    %391 = vmatpush1.msra.mxu0 0.0
    %392 = vmatprep.subr.mxu0 0.0
    %393 = vmatpush1.msra.mxu0 0.0
    %394 = vmatprep.subr.mxu0 0.0
    %395 = vmatpush1.msra.mxu0 0.0
    %396 = vmatprep.subr.mxu0 0.0
    %397 = vmatpush1.msra.mxu0 0.0
    %398 = vmatprep.subr.mxu0 0.0
    %399 = vmatpush1.msra.mxu0 0.0
    %400 = vmatprep.subr.mxu0 0.0
    %401 = vmatpush1.msra.mxu0 0.0
    %402 = vmatprep.subr.mxu0 0.0
    %403 = vmatpush1.msra.mxu0 0.0
    %404 = vmatprep.subr.mxu0 0.0
    %405 = vmatpush1.msra.mxu0 0.0
    %406 = vmatprep.mubr.f32.mxu0 0.0
    %407 = vmatmul.mubr.f32.gmra.mrb[0].mxu0 %v340
    %v408 = vpop.f32.mrb[0].mxu0
    %v409 = vadd.f32 0.0, %v408
    %v410 = vpop.f32.mrb[0].mxu0
    %411 = vdwg.mxu0
    %413 = vrot.lane.b32.xlu0 %v139, 64
    %v414 = vpop.permute.xlu0 %413
    %v417 = vsel %vm312, %v334, 0
    %419 = vmatprep.subr.mxu0 0.0
    %420 = vmatpush1.msra.mxu0 %v414
    %421 = vmatprep.subr.mxu0 0.0
    %422 = vmatpush1.msra.mxu0 0.0
    %423 = vmatprep.subr.mxu0 0.0
    %424 = vmatpush1.msra.mxu0 0.0
    %425 = vmatprep.subr.mxu0 0.0
    %426 = vmatpush1.msra.mxu0 0.0
    %427 = vmatprep.subr.mxu0 0.0
    %428 = vmatpush1.msra.mxu0 0.0
    %429 = vmatprep.subr.mxu0 0.0
    %430 = vmatpush1.msra.mxu0 0.0
    %431 = vmatprep.subr.mxu0 0.0
    %432 = vmatpush1.msra.mxu0 0.0
    %433 = vmatprep.subr.mxu0 0.0
    %434 = vmatpush1.msra.mxu0 0.0
    %435 = vmatprep.subr.mxu0 0.0
    %436 = vmatpush1.msra.mxu0 0.0
    %437 = vmatprep.subr.mxu0 0.0
    %438 = vmatpush1.msra.mxu0 0.0
    %439 = vmatprep.subr.mxu0 0.0
    %440 = vmatpush1.msra.mxu0 0.0
    %441 = vmatprep.subr.mxu0 0.0
    %442 = vmatpush1.msra.mxu0 0.0
    %443 = vmatprep.subr.mxu0 0.0
    %444 = vmatpush1.msra.mxu0 0.0
    %445 = vmatprep.subr.mxu0 0.0
    %446 = vmatpush1.msra.mxu0 0.0
    %447 = vmatprep.subr.mxu0 0.0
    %448 = vmatpush1.msra.mxu0 0.0
    %449 = vmatprep.subr.mxu0 0.0
    %450 = vmatpush1.msra.mxu0 0.0
    %451 = vmatprep.subr.mxu0 0.0
    %452 = vmatpush1.msra.mxu0 0.0
    %453 = vmatprep.subr.mxu0 0.0
    %454 = vmatpush1.msra.mxu0 0.0
    %455 = vmatprep.subr.mxu0 0.0
    %456 = vmatpush1.msra.mxu0 0.0
    %457 = vmatprep.subr.mxu0 0.0
    %458 = vmatpush1.msra.mxu0 0.0
    %459 = vmatprep.subr.mxu0 0.0
    %460 = vmatpush1.msra.mxu0 0.0
    %461 = vmatprep.subr.mxu0 0.0
    %462 = vmatpush1.msra.mxu0 0.0
    %463 = vmatprep.subr.mxu0 0.0
    %464 = vmatpush1.msra.mxu0 0.0
    %465 = vmatprep.subr.mxu0 0.0
    %466 = vmatpush1.msra.mxu0 0.0
    %467 = vmatprep.subr.mxu0 0.0
    %468 = vmatpush1.msra.mxu0 0.0
    %469 = vmatprep.subr.mxu0 0.0
    %470 = vmatpush1.msra.mxu0 0.0
    %471 = vmatprep.subr.mxu0 0.0
    %472 = vmatpush1.msra.mxu0 0.0
    %473 = vmatprep.subr.mxu0 0.0
    %474 = vmatpush1.msra.mxu0 0.0
    %475 = vmatprep.subr.mxu0 0.0
    %476 = vmatpush1.msra.mxu0 0.0
    %477 = vmatprep.subr.mxu0 0.0
    %478 = vmatpush1.msra.mxu0 0.0
    %479 = vmatprep.subr.mxu0 0.0
    %480 = vmatpush1.msra.mxu0 0.0
    %481 = vmatprep.subr.mxu0 0.0
    %482 = vmatpush1.msra.mxu0 0.0
    %483 = vmatprep.mubr.f32.mxu0 0.0
    %484 = vmatmul.mubr.f32.gmra.mrb[0].mxu0 %v417
    %v485 = vpop.f32.mrb[0].mxu0
    %v486 = vadd.f32 0.0, %v485
    %v487 = vpop.f32.mrb[0].mxu0
    %488 = vdwg.mxu0
    %v489 = vld [vmem:[#allocation2 + $0xe3] ss:$0 sm:$0xff]
    %494 = vrot.lane.b32.xlu0 %v37, 32
    %v495 = vpop.permute.xlu0 %494
    %496 = vrot.lane.b32.xlu0 %v38, 32
    %v497 = vpop.permute.xlu0 %496
    %498 = vrot.lane.b32.xlu0 %v39, 32
    %v499 = vpop.permute.xlu0 %498
    %500 = vrot.lane.b32.xlu0 %v40, 32
    %v501 = vpop.permute.xlu0 %500
    %v507 = vsel %vm41, %v409, 0
    %v510 = vsel %vm41, %v486, 0
    %512 = vmatprep.subr.mxu0 0.0
    %513 = vmatpush1.msra.mxu0 %v495
    %514 = vmatprep.subr.mxu0 0.0
    %515 = vmatpush1.msra.mxu0 %v497
    %516 = vmatprep.subr.mxu0 0.0
    %517 = vmatpush1.msra.mxu0 %v499
    %518 = vmatprep.subr.mxu0 0.0
    %519 = vmatpush1.msra.mxu0 %v501
    %520 = vmatprep.subr.mxu0 0.0
    %521 = vmatpush1.msra.mxu0 0.0
    %522 = vmatprep.subr.mxu0 0.0
    %523 = vmatpush1.msra.mxu0 0.0
    %524 = vmatprep.subr.mxu0 0.0
    %525 = vmatpush1.msra.mxu0 0.0
    %526 = vmatprep.subr.mxu0 0.0
    %527 = vmatpush1.msra.mxu0 0.0
    %528 = vmatprep.subr.mxu0 0.0
    %529 = vmatpush1.msra.mxu0 0.0
    %530 = vmatprep.subr.mxu0 0.0
    %531 = vmatpush1.msra.mxu0 0.0
    %532 = vmatprep.subr.mxu0 0.0
    %533 = vmatpush1.msra.mxu0 0.0
    %534 = vmatprep.subr.mxu0 0.0
    %535 = vmatpush1.msra.mxu0 0.0
    %536 = vmatprep.subr.mxu0 0.0
    %537 = vmatpush1.msra.mxu0 0.0
    %538 = vmatprep.subr.mxu0 0.0
    %539 = vmatpush1.msra.mxu0 0.0
    %540 = vmatprep.subr.mxu0 0.0
    %541 = vmatpush1.msra.mxu0 0.0
    %542 = vmatprep.subr.mxu0 0.0
    %543 = vmatpush1.msra.mxu0 0.0
    %544 = vmatprep.subr.mxu0 0.0
    %545 = vmatpush1.msra.mxu0 0.0
    %546 = vmatprep.subr.mxu0 0.0
    %547 = vmatpush1.msra.mxu0 0.0
    %548 = vmatprep.subr.mxu0 0.0
    %549 = vmatpush1.msra.mxu0 0.0
    %550 = vmatprep.subr.mxu0 0.0
    %551 = vmatpush1.msra.mxu0 0.0
    %552 = vmatprep.subr.mxu0 0.0
    %553 = vmatpush1.msra.mxu0 0.0
    %554 = vmatprep.subr.mxu0 0.0
    %555 = vmatpush1.msra.mxu0 0.0
    %556 = vmatprep.subr.mxu0 0.0
    %557 = vmatpush1.msra.mxu0 0.0
    %558 = vmatprep.subr.mxu0 0.0
    %559 = vmatpush1.msra.mxu0 0.0
    %560 = vmatprep.subr.mxu0 0.0
    %561 = vmatpush1.msra.mxu0 0.0
    %562 = vmatprep.subr.mxu0 0.0
    %563 = vmatpush1.msra.mxu0 0.0
    %564 = vmatprep.subr.mxu0 0.0
    %565 = vmatpush1.msra.mxu0 0.0
    %566 = vmatprep.subr.mxu0 0.0
    %567 = vmatpush1.msra.mxu0 0.0
    %568 = vmatprep.subr.mxu0 0.0
    %569 = vmatpush1.msra.mxu0 0.0
    %570 = vmatprep.subr.mxu0 0.0
    %571 = vmatpush1.msra.mxu0 0.0
    %572 = vmatprep.subr.mxu0 0.0
    %573 = vmatpush1.msra.mxu0 0.0
    %574 = vmatprep.subr.mxu0 0.0
    %575 = vmatpush1.msra.mxu0 0.0
    %576 = vmatprep.mubr.f32.mxu0 0.0
    %577 = vmatmul.mubr.f32.gmra.mrb[0].mxu0 %v507
    %v578 = vpop.f32.mrb[0].mxu0
    %v579 = vadd.f32 %v489, %v578
    %v580 = vpop.f32.mrb[0].mxu0
    %581 = vmatprep.mubr.f32.mxu0 0.0
    %582 = vmatmul.mubr.f32.gmra.mrb[0].mxu0 %v510
    %v583 = vpop.f32.mrb[0].mxu0
    %v584 = vadd.f32 %v489, %v583
    %v585 = vpop.f32.mrb[0].mxu0
    %586 = vdwg.mxu0
    %v587 = vadd.f32 %v31, %v579
    %v588 = vadd.f32 %v32, %v584
    %v589 = vld [vmem:[#allocation2 + $0xe4] ss:$0 sm:$0xff]
    %v590 = vld [vmem:[#allocation2 + $0xe5] ss:$0 sm:$0xff]
    %v591 = vsel %vm41, %v587, 0.0
    %592 = vadd.xlane.f32.xlu0 %v591
    %v593 = vpop.xlane.xlu0 %592
    %v594 = vsel %vm41, %v588, 0.0
    %595 = vadd.xlane.f32.xlu0 %v594
    %v596 = vpop.xlane.xlu0 %595
    %v597 = vrcp.pop 32.0
    %v598 = vmul.f32 %v593, %v597
    %v599 = vmul.f32 %v596, %v597
    %v600 = vmul.f32 %v587, %v587
    %v601 = vmul.f32 %v588, %v588
    %v602 = vsel %vm41, %v600, 0.0
    %603 = vadd.xlane.f32.xlu0 %v602
    %v604 = vpop.xlane.xlu0 %603
    %v605 = vsel %vm41, %v601, 0.0
    %606 = vadd.xlane.f32.xlu0 %v605
    %v607 = vpop.xlane.xlu0 %606
    %v608 = vmul.f32 %v604, %v597
    %v609 = vmul.f32 %v607, %v597
    %v610 = vmul.f32 %v598, %v598
    %v611 = vmul.f32 %v599, %v599
    %v612 = vsub.f32 %v608, %v610
    %v613 = vsub.f32 %v609, %v611
    %v614 = vmax.f32 %v612, 0.0
    %v615 = vmax.f32 %v613, 0.0
    %v616 = vsub.f32 %v587, %v598
    %v617 = vsub.f32 %v588, %v599
    %v618 = vadd.f32 %v614, 1e-12
    %v619 = vadd.f32 %v615, 1e-12
    %v620 = vrsqrt.pop %v618
    %v621 = vrsqrt.pop %v619
    %v622 = vmul.f32 %v616, %v620
    %v623 = vmul.f32 %v617, %v621
    %v624 = vmul.f32 %v622, %v589
    %v625 = vmul.f32 %v623, %v589
    %v626 = vadd.f32 %v624, %v590
    %v627 = vadd.f32 %v625, %v590
    %v628 = vld [vmem:[#allocation2 + $0x8] sm:$0xff]
    %v629 = vld [vmem:[#allocation2 + $0x18] sm:$0xff]
    %v630 = vld [vmem:[#allocation2 + $0x28] sm:$0xff]
    %v631 = vld [vmem:[#allocation2 + $0x38] sm:$0xff]
    %v632 = vld [vmem:[#allocation2 + $0xe6] ss:$0 sm:$0xff]
    %v634 = vsel %vm41, %v626, 0
    %v637 = vsel %vm41, %v627, 0
    %639 = vmatprep.subr.mxu0 0.0
    %640 = vmatpush1.msra.mxu0 %v628
    %641 = vmatprep.subr.mxu0 0.0
    %642 = vmatpush1.msra.mxu0 %v629
    %643 = vmatprep.subr.mxu0 0.0
    %644 = vmatpush1.msra.mxu0 %v630
    %645 = vmatprep.subr.mxu0 0.0
    %646 = vmatpush1.msra.mxu0 %v631
    %647 = vmatprep.subr.mxu0 0.0
    %648 = vmatpush1.msra.mxu0 0.0
    %649 = vmatprep.subr.mxu0 0.0
    %650 = vmatpush1.msra.mxu0 0.0
    %651 = vmatprep.subr.mxu0 0.0
    %652 = vmatpush1.msra.mxu0 0.0
    %653 = vmatprep.subr.mxu0 0.0
    %654 = vmatpush1.msra.mxu0 0.0
    %655 = vmatprep.subr.mxu0 0.0
    %656 = vmatpush1.msra.mxu0 0.0
    %657 = vmatprep.subr.mxu0 0.0
    %658 = vmatpush1.msra.mxu0 0.0
    %659 = vmatprep.subr.mxu0 0.0
    %660 = vmatpush1.msra.mxu0 0.0
    %661 = vmatprep.subr.mxu0 0.0
    %662 = vmatpush1.msra.mxu0 0.0
    %663 = vmatprep.subr.mxu0 0.0
    %664 = vmatpush1.msra.mxu0 0.0
    %665 = vmatprep.subr.mxu0 0.0
    %666 = vmatpush1.msra.mxu0 0.0
    %667 = vmatprep.subr.mxu0 0.0
    %668 = vmatpush1.msra.mxu0 0.0
    %669 = vmatprep.subr.mxu0 0.0
    %670 = vmatpush1.msra.mxu0 0.0
    %671 = vmatprep.subr.mxu0 0.0
    %672 = vmatpush1.msra.mxu0 0.0
    %673 = vmatprep.subr.mxu0 0.0
    %674 = vmatpush1.msra.mxu0 0.0
    %675 = vmatprep.subr.mxu0 0.0
    %676 = vmatpush1.msra.mxu0 0.0
    %677 = vmatprep.subr.mxu0 0.0
    %678 = vmatpush1.msra.mxu0 0.0
    %679 = vmatprep.subr.mxu0 0.0
    %680 = vmatpush1.msra.mxu0 0.0
    %681 = vmatprep.subr.mxu0 0.0
    %682 = vmatpush1.msra.mxu0 0.0
    %683 = vmatprep.subr.mxu0 0.0
    %684 = vmatpush1.msra.mxu0 0.0
    %685 = vmatprep.subr.mxu0 0.0
    %686 = vmatpush1.msra.mxu0 0.0
    %687 = vmatprep.subr.mxu0 0.0
    %688 = vmatpush1.msra.mxu0 0.0
    %689 = vmatprep.subr.mxu0 0.0
    %690 = vmatpush1.msra.mxu0 0.0
    %691 = vmatprep.subr.mxu0 0.0
    %692 = vmatpush1.msra.mxu0 0.0
    %693 = vmatprep.subr.mxu0 0.0
    %694 = vmatpush1.msra.mxu0 0.0
    %695 = vmatprep.subr.mxu0 0.0
    %696 = vmatpush1.msra.mxu0 0.0
    %697 = vmatprep.subr.mxu0 0.0
    %698 = vmatpush1.msra.mxu0 0.0
    %699 = vmatprep.subr.mxu0 0.0
    %700 = vmatpush1.msra.mxu0 0.0
    %701 = vmatprep.subr.mxu0 0.0
    %702 = vmatpush1.msra.mxu0 0.0
    %703 = vmatprep.mubr.f32.mxu0 0.0
    %704 = vmatmul.mubr.f32.gmra.mrb[0].mxu0 %v634
    %v705 = vpop.f32.mrb[0].mxu0
    %v706 = vadd.f32 %v632, %v705
    %v707 = vpop.f32.mrb[0].mxu0
    %708 = vmatprep.mubr.f32.mxu0 0.0
    %709 = vmatmul.mubr.f32.gmra.mrb[0].mxu0 %v637
    %v710 = vpop.f32.mrb[0].mxu0
    %v711 = vadd.f32 %v632, %v710
    %v712 = vpop.f32.mrb[0].mxu0
    %713 = vdwg.mxu0
    %v714 = vmax.f32 %v706, 0.0
    %v715 = vmax.f32 %v711, 0.0
    %v716 = vld [vmem:[#allocation2 + $0x40] sm:$0xff]
    %v717 = vld [vmem:[#allocation2 + $0x50] sm:$0xff]
    %v718 = vld [vmem:[#allocation2 + $0x60] sm:$0xff]
    %v719 = vld [vmem:[#allocation2 + $0x70] sm:$0xff]
    %v720 = vld [vmem:[#allocation2 + $0x80] sm:$0xff]
    %v721 = vld [vmem:[#allocation2 + $0x90] sm:$0xff]
    %v722 = vld [vmem:[#allocation2 + $0xa0] sm:$0xff]
    %v723 = vld [vmem:[#allocation2 + $0xb0] sm:$0xff]
    %v724 = vld [vmem:[#allocation2 + $0xe7] ss:$0 sm:$0xff]
    %vm725 = vcmask 523264
    %v727 = vsel %vm725, %v714, 0
    %v730 = vsel %vm725, %v715, 0
    %732 = vmatprep.subr.mxu0 0.0
    %733 = vmatpush1.msra.mxu0 %v716
    %734 = vmatprep.subr.mxu0 0.0
    %735 = vmatpush1.msra.mxu0 %v717
    %736 = vmatprep.subr.mxu0 0.0
    %737 = vmatpush1.msra.mxu0 %v718
    %738 = vmatprep.subr.mxu0 0.0
    %739 = vmatpush1.msra.mxu0 %v719
    %740 = vmatprep.subr.mxu0 0.0
    %741 = vmatpush1.msra.mxu0 %v720
    %742 = vmatprep.subr.mxu0 0.0
    %743 = vmatpush1.msra.mxu0 %v721
    %744 = vmatprep.subr.mxu0 0.0
    %745 = vmatpush1.msra.mxu0 %v722
    %746 = vmatprep.subr.mxu0 0.0
    %747 = vmatpush1.msra.mxu0 %v723
    %748 = vmatprep.subr.mxu0 0.0
    %749 = vmatpush1.msra.mxu0 0.0
    %750 = vmatprep.subr.mxu0 0.0
    %751 = vmatpush1.msra.mxu0 0.0
    %752 = vmatprep.subr.mxu0 0.0
    %753 = vmatpush1.msra.mxu0 0.0
    %754 = vmatprep.subr.mxu0 0.0
    %755 = vmatpush1.msra.mxu0 0.0
    %756 = vmatprep.subr.mxu0 0.0
    %757 = vmatpush1.msra.mxu0 0.0
    %758 = vmatprep.subr.mxu0 0.0
    %759 = vmatpush1.msra.mxu0 0.0
    %760 = vmatprep.subr.mxu0 0.0
    %761 = vmatpush1.msra.mxu0 0.0
    %762 = vmatprep.subr.mxu0 0.0
    %763 = vmatpush1.msra.mxu0 0.0
    %764 = vmatprep.subr.mxu0 0.0
    %765 = vmatpush1.msra.mxu0 0.0
    %766 = vmatprep.subr.mxu0 0.0
    %767 = vmatpush1.msra.mxu0 0.0
    %768 = vmatprep.subr.mxu0 0.0
    %769 = vmatpush1.msra.mxu0 0.0
    %770 = vmatprep.subr.mxu0 0.0
    %771 = vmatpush1.msra.mxu0 0.0
    %772 = vmatprep.subr.mxu0 0.0
    %773 = vmatpush1.msra.mxu0 0.0
    %774 = vmatprep.subr.mxu0 0.0
    %775 = vmatpush1.msra.mxu0 0.0
    %776 = vmatprep.subr.mxu0 0.0
    %777 = vmatpush1.msra.mxu0 0.0
    %778 = vmatprep.subr.mxu0 0.0
    %779 = vmatpush1.msra.mxu0 0.0
    %780 = vmatprep.subr.mxu0 0.0
    %781 = vmatpush1.msra.mxu0 0.0
    %782 = vmatprep.subr.mxu0 0.0
    %783 = vmatpush1.msra.mxu0 0.0
    %784 = vmatprep.subr.mxu0 0.0
    %785 = vmatpush1.msra.mxu0 0.0
    %786 = vmatprep.subr.mxu0 0.0
    %787 = vmatpush1.msra.mxu0 0.0
    %788 = vmatprep.subr.mxu0 0.0
    %789 = vmatpush1.msra.mxu0 0.0
    %790 = vmatprep.subr.mxu0 0.0
    %791 = vmatpush1.msra.mxu0 0.0
    %792 = vmatprep.subr.mxu0 0.0
    %793 = vmatpush1.msra.mxu0 0.0
    %794 = vmatprep.subr.mxu0 0.0
    %795 = vmatpush1.msra.mxu0 0.0
    %796 = vmatprep.mubr.f32.mxu0 0.0
    %797 = vmatmul.mubr.f32.gmra.mrb[0].mxu0 %v727
    %v798 = vpop.f32.mrb[0].mxu0
    %v799 = vadd.f32 %v724, %v798
    %v800 = vpop.f32.mrb[0].mxu0
    %801 = vmatprep.mubr.f32.mxu0 0.0
    %802 = vmatmul.mubr.f32.gmra.mrb[0].mxu0 %v730
    %v803 = vpop.f32.mrb[0].mxu0
    %v804 = vadd.f32 %v724, %v803
    %v805 = vpop.f32.mrb[0].mxu0
    %806 = vdwg.mxu0
    %v807 = vadd.f32 %v626, %v799
    %v808 = vadd.f32 %v627, %v804
    %v809 = vld [vmem:[#allocation2 + $0xf0] ss:$0 sm:$0xff]
    %v810 = vld [vmem:[#allocation2 + $0xf1] ss:$0 sm:$0xff]
    %v811 = vsel %vm41, %v807, 0.0
    %812 = vadd.xlane.f32.xlu0 %v811
    %v813 = vpop.xlane.xlu0 %812
    %v814 = vsel %vm41, %v808, 0.0
    %815 = vadd.xlane.f32.xlu0 %v814
    %v816 = vpop.xlane.xlu0 %815
    %v817 = vmul.f32 %v813, %v597
    %v818 = vmul.f32 %v816, %v597
    %v819 = vmul.f32 %v807, %v807
    %v820 = vmul.f32 %v808, %v808
    %v821 = vsel %vm41, %v819, 0.0
    %822 = vadd.xlane.f32.xlu0 %v821
    %v823 = vpop.xlane.xlu0 %822
    %v824 = vsel %vm41, %v820, 0.0
    %825 = vadd.xlane.f32.xlu0 %v824
    %v826 = vpop.xlane.xlu0 %825
    %v827 = vmul.f32 %v823, %v597
    %v828 = vmul.f32 %v826, %v597
    %v829 = vmul.f32 %v817, %v817
    %v830 = vmul.f32 %v818, %v818
    %v831 = vsub.f32 %v827, %v829
    %v832 = vsub.f32 %v828, %v830
    %v833 = vmax.f32 %v831, 0.0
    %v834 = vmax.f32 %v832, 0.0
    %v835 = vsub.f32 %v807, %v817
    %v836 = vsub.f32 %v808, %v818
    %v837 = vadd.f32 %v833, 1e-12
    %v838 = vadd.f32 %v834, 1e-12
    %v839 = vrsqrt.pop %v837
    %v840 = vrsqrt.pop %v838
    %v841 = vmul.f32 %v835, %v839
    %v842 = vmul.f32 %v836, %v840
    %v843 = vmul.f32 %v841, %v809
    %v844 = vmul.f32 %v842, %v809
    %v845 = vadd.f32 %v843, %v810
    %v846 = vadd.f32 %v844, %v810
    %v847 = vld [vmem:[#allocation2 + $0xf3] ss:$0 sm:$0xff]
    %852 = vrot.lane.b32.xlu0 %v628, 32
    %v853 = vpop.permute.xlu0 %852
    %854 = vrot.lane.b32.xlu0 %v629, 32
    %v855 = vpop.permute.xlu0 %854
    %856 = vrot.lane.b32.xlu0 %v630, 32
    %v857 = vpop.permute.xlu0 %856
    %858 = vrot.lane.b32.xlu0 %v631, 32
    %v859 = vpop.permute.xlu0 %858
    %v865 = vsel %vm41, %v845, 0
    %v868 = vsel %vm41, %v846, 0
    %870 = vmatprep.subr.mxu0 0.0
    %871 = vmatpush1.msra.mxu0 %v853
    %872 = vmatprep.subr.mxu0 0.0
    %873 = vmatpush1.msra.mxu0 %v855
    %874 = vmatprep.subr.mxu0 0.0
    %875 = vmatpush1.msra.mxu0 %v857
    %876 = vmatprep.subr.mxu0 0.0
    %877 = vmatpush1.msra.mxu0 %v859
    %878 = vmatprep.subr.mxu0 0.0
    %879 = vmatpush1.msra.mxu0 0.0
    %880 = vmatprep.subr.mxu0 0.0
    %881 = vmatpush1.msra.mxu0 0.0
    %882 = vmatprep.subr.mxu0 0.0
    %883 = vmatpush1.msra.mxu0 0.0
    %884 = vmatprep.subr.mxu0 0.0
    %885 = vmatpush1.msra.mxu0 0.0
    %886 = vmatprep.subr.mxu0 0.0
    %887 = vmatpush1.msra.mxu0 0.0
    %888 = vmatprep.subr.mxu0 0.0
    %889 = vmatpush1.msra.mxu0 0.0
    %890 = vmatprep.subr.mxu0 0.0
    %891 = vmatpush1.msra.mxu0 0.0
    %892 = vmatprep.subr.mxu0 0.0
    %893 = vmatpush1.msra.mxu0 0.0
    %894 = vmatprep.subr.mxu0 0.0
    %895 = vmatpush1.msra.mxu0 0.0
    %896 = vmatprep.subr.mxu0 0.0
    %897 = vmatpush1.msra.mxu0 0.0
    %898 = vmatprep.subr.mxu0 0.0
    %899 = vmatpush1.msra.mxu0 0.0
    %900 = vmatprep.subr.mxu0 0.0
    %901 = vmatpush1.msra.mxu0 0.0
    %902 = vmatprep.subr.mxu0 0.0
    %903 = vmatpush1.msra.mxu0 0.0
    %904 = vmatprep.subr.mxu0 0.0
    %905 = vmatpush1.msra.mxu0 0.0
    %906 = vmatprep.subr.mxu0 0.0
    %907 = vmatpush1.msra.mxu0 0.0
    %908 = vmatprep.subr.mxu0 0.0
    %909 = vmatpush1.msra.mxu0 0.0
    %910 = vmatprep.subr.mxu0 0.0
    %911 = vmatpush1.msra.mxu0 0.0
    %912 = vmatprep.subr.mxu0 0.0
    %913 = vmatpush1.msra.mxu0 0.0
    %914 = vmatprep.subr.mxu0 0.0
    %915 = vmatpush1.msra.mxu0 0.0
    %916 = vmatprep.subr.mxu0 0.0
    %917 = vmatpush1.msra.mxu0 0.0
    %918 = vmatprep.subr.mxu0 0.0
    %919 = vmatpush1.msra.mxu0 0.0
    %920 = vmatprep.subr.mxu0 0.0
    %921 = vmatpush1.msra.mxu0 0.0
    %922 = vmatprep.subr.mxu0 0.0
    %923 = vmatpush1.msra.mxu0 0.0
    %924 = vmatprep.subr.mxu0 0.0
    %925 = vmatpush1.msra.mxu0 0.0
    %926 = vmatprep.subr.mxu0 0.0
    %927 = vmatpush1.msra.mxu0 0.0
    %928 = vmatprep.subr.mxu0 0.0
    %929 = vmatpush1.msra.mxu0 0.0
    %930 = vmatprep.subr.mxu0 0.0
    %931 = vmatpush1.msra.mxu0 0.0
    %932 = vmatprep.subr.mxu0 0.0
    %933 = vmatpush1.msra.mxu0 0.0
    %934 = vmatprep.mubr.f32.mxu0 0.0
    %935 = vmatmul.mubr.f32.gmra.mrb[0].mxu0 %v865
    %v936 = vpop.f32.mrb[0].mxu0
    %v937 = vadd.f32 %v847, %v936
    %v938 = vpop.f32.mrb[0].mxu0
    %939 = vmatprep.mubr.f32.mxu0 0.0
    %940 = vmatmul.mubr.f32.gmra.mrb[0].mxu0 %v868
    %v941 = vpop.f32.mrb[0].mxu0
    %v942 = vadd.f32 %v847, %v941
    %v943 = vpop.f32.mrb[0].mxu0
    %944 = vdwg.mxu0
    %v945 = vmax.f32 %v937, 0.0
    %v946 = vmax.f32 %v942, 0.0
    %v947 = vld [vmem:[#allocation2 + $0xc0] sm:$0xff]
    %v948 = vld [vmem:[#allocation2 + $0xd0] sm:$0xff]
    %v949 = vld [vmem:[#allocation2 + $0xf4] ss:$0 sm:$0xff]
    %vm950 = vcmask 130048
    %v952 = vsel %vm950, %v945, 0
    %v955 = vsel %vm950, %v946, 0
    %957 = vmatprep.subr.mxu0 0.0
    %958 = vmatpush1.msra.mxu0 %v947
    %959 = vmatprep.subr.mxu0 0.0
    %960 = vmatpush1.msra.mxu0 %v948
    %961 = vmatprep.subr.mxu0 0.0
    %962 = vmatpush1.msra.mxu0 0.0
    %963 = vmatprep.subr.mxu0 0.0
    %964 = vmatpush1.msra.mxu0 0.0
    %965 = vmatprep.subr.mxu0 0.0
    %966 = vmatpush1.msra.mxu0 0.0
    %967 = vmatprep.subr.mxu0 0.0
    %968 = vmatpush1.msra.mxu0 0.0
    %969 = vmatprep.subr.mxu0 0.0
    %970 = vmatpush1.msra.mxu0 0.0
    %971 = vmatprep.subr.mxu0 0.0
    %972 = vmatpush1.msra.mxu0 0.0
    %973 = vmatprep.subr.mxu0 0.0
    %974 = vmatpush1.msra.mxu0 0.0
    %975 = vmatprep.subr.mxu0 0.0
    %976 = vmatpush1.msra.mxu0 0.0
    %977 = vmatprep.subr.mxu0 0.0
    %978 = vmatpush1.msra.mxu0 0.0
    %979 = vmatprep.subr.mxu0 0.0
    %980 = vmatpush1.msra.mxu0 0.0
    %981 = vmatprep.subr.mxu0 0.0
    %982 = vmatpush1.msra.mxu0 0.0
    %983 = vmatprep.subr.mxu0 0.0
    %984 = vmatpush1.msra.mxu0 0.0
    %985 = vmatprep.subr.mxu0 0.0
    %986 = vmatpush1.msra.mxu0 0.0
    %987 = vmatprep.subr.mxu0 0.0
    %988 = vmatpush1.msra.mxu0 0.0
    %989 = vmatprep.subr.mxu0 0.0
    %990 = vmatpush1.msra.mxu0 0.0
    %991 = vmatprep.subr.mxu0 0.0
    %992 = vmatpush1.msra.mxu0 0.0
    %993 = vmatprep.subr.mxu0 0.0
    %994 = vmatpush1.msra.mxu0 0.0
    %995 = vmatprep.subr.mxu0 0.0
    %996 = vmatpush1.msra.mxu0 0.0
    %997 = vmatprep.subr.mxu0 0.0
    %998 = vmatpush1.msra.mxu0 0.0
    %999 = vmatprep.subr.mxu0 0.0
    %1000 = vmatpush1.msra.mxu0 0.0
    %1001 = vmatprep.subr.mxu0 0.0
    %1002 = vmatpush1.msra.mxu0 0.0
    %1003 = vmatprep.subr.mxu0 0.0
    %1004 = vmatpush1.msra.mxu0 0.0
    %1005 = vmatprep.subr.mxu0 0.0
    %1006 = vmatpush1.msra.mxu0 0.0
    %1007 = vmatprep.subr.mxu0 0.0
    %1008 = vmatpush1.msra.mxu0 0.0
    %1009 = vmatprep.subr.mxu0 0.0
    %1010 = vmatpush1.msra.mxu0 0.0
    %1011 = vmatprep.subr.mxu0 0.0
    %1012 = vmatpush1.msra.mxu0 0.0
    %1013 = vmatprep.subr.mxu0 0.0
    %1014 = vmatpush1.msra.mxu0 0.0
    %1015 = vmatprep.subr.mxu0 0.0
    %1016 = vmatpush1.msra.mxu0 0.0
    %1017 = vmatprep.subr.mxu0 0.0
    %1018 = vmatpush1.msra.mxu0 0.0
    %1019 = vmatprep.subr.mxu0 0.0
    %1020 = vmatpush1.msra.mxu0 0.0
    %1021 = vmatprep.mubr.f32.mxu0 0.0
    %1022 = vmatmul.mubr.f32.gmra.mrb[0].mxu0 %v952
    %v1023 = vpop.f32.mrb[0].mxu0
    %v1024 = vadd.f32 %v949, %v1023
    %v1025 = vpop.f32.mrb[0].mxu0
    %1026 = vmatprep.mubr.f32.mxu0 0.0
    %1027 = vmatmul.mubr.f32.gmra.mrb[0].mxu0 %v955
    %v1028 = vpop.f32.mrb[0].mxu0
    %v1029 = vadd.f32 %v949, %v1028
    %v1030 = vpop.f32.mrb[0].mxu0
    %1031 = vdwg.mxu0
    %vm1032 = vcmp.gt.f32.partialorder %v35, 0.5
    %vm1033 = vcmp.gt.f32.partialorder %v36, 0.5
    %v1034 = vlaneseq
    %v1035 = vand.u32 %v1034, 127
    %vm1036 = vcmp.eq.s32.totalorder %v1035, 0
    %v1037 = vsel %vm1032, 1, 0
    %v1038 = vsel %vm1033, 1, 0
    %1039 = vset.pattern.permute.xlu0 0
    %1040 = vperm.xlu0 %1039, %v1037
    %v1041 = vpop.permute.xlu0 %1040
    %1042 = vset.pattern.permute.xlu0 0
    %1043 = vperm.xlu0 %1042, %v1038
    %v1044 = vpop.permute.xlu0 %1043
    %vm1045 = vcmp.eq.s32.totalorder %v1041, 1
    %vm1046 = vcmp.eq.s32.totalorder %v1044, 1
    %v1047 = vsel %vm1045, -inf, %v1024
    %v1048 = vsel %vm1046, -inf, %v1029
    %vm1049 = vmand %vm1045, %vm1036
    %vm1050 = vmand %vm1046, %vm1036
    %v1051 = vsel %vm1049, inf, %v1047
    %v1052 = vsel %vm1050, inf, %v1048
    %v1054 = vsel %vm312, %v33, 0
    %1056 = vmatprep.subr.mxu0 0.0
    %1057 = vmatpush1.msra.mxu0 %v845
    %1058 = vmatprep.subr.mxu0 0.0
    %1059 = vmatpush1.msra.mxu0 0.0
    %1060 = vmatprep.subr.mxu0 0.0
    %1061 = vmatpush1.msra.mxu0 0.0
    %1062 = vmatprep.subr.mxu0 0.0
    %1063 = vmatpush1.msra.mxu0 0.0
    %1064 = vmatprep.subr.mxu0 0.0
    %1065 = vmatpush1.msra.mxu0 0.0
    %1066 = vmatprep.subr.mxu0 0.0
    %1067 = vmatpush1.msra.mxu0 0.0
    %1068 = vmatprep.subr.mxu0 0.0
    %1069 = vmatpush1.msra.mxu0 0.0
    %1070 = vmatprep.subr.mxu0 0.0
    %1071 = vmatpush1.msra.mxu0 0.0
    %1072 = vmatprep.subr.mxu0 0.0
    %1073 = vmatpush1.msra.mxu0 0.0
    %1074 = vmatprep.subr.mxu0 0.0
    %1075 = vmatpush1.msra.mxu0 0.0
    %1076 = vmatprep.subr.mxu0 0.0
    %1077 = vmatpush1.msra.mxu0 0.0
    %1078 = vmatprep.subr.mxu0 0.0
    %1079 = vmatpush1.msra.mxu0 0.0
    %1080 = vmatprep.subr.mxu0 0.0
    %1081 = vmatpush1.msra.mxu0 0.0
    %1082 = vmatprep.subr.mxu0 0.0
    %1083 = vmatpush1.msra.mxu0 0.0
    %1084 = vmatprep.subr.mxu0 0.0
    %1085 = vmatpush1.msra.mxu0 0.0
    %1086 = vmatprep.subr.mxu0 0.0
    %1087 = vmatpush1.msra.mxu0 0.0
    %1088 = vmatprep.subr.mxu0 0.0
    %1089 = vmatpush1.msra.mxu0 0.0
    %1090 = vmatprep.subr.mxu0 0.0
    %1091 = vmatpush1.msra.mxu0 0.0
    %1092 = vmatprep.subr.mxu0 0.0
    %1093 = vmatpush1.msra.mxu0 0.0
    %1094 = vmatprep.subr.mxu0 0.0
    %1095 = vmatpush1.msra.mxu0 0.0
    %1096 = vmatprep.subr.mxu0 0.0
    %1097 = vmatpush1.msra.mxu0 0.0
    %1098 = vmatprep.subr.mxu0 0.0
    %1099 = vmatpush1.msra.mxu0 0.0
    %1100 = vmatprep.subr.mxu0 0.0
    %1101 = vmatpush1.msra.mxu0 0.0
    %1102 = vmatprep.subr.mxu0 0.0
    %1103 = vmatpush1.msra.mxu0 0.0
    %1104 = vmatprep.subr.mxu0 0.0
    %1105 = vmatpush1.msra.mxu0 0.0
    %1106 = vmatprep.subr.mxu0 0.0
    %1107 = vmatpush1.msra.mxu0 0.0
    %1108 = vmatprep.subr.mxu0 0.0
    %1109 = vmatpush1.msra.mxu0 0.0
    %1110 = vmatprep.subr.mxu0 0.0
    %1111 = vmatpush1.msra.mxu0 0.0
    %1112 = vmatprep.subr.mxu0 0.0
    %1113 = vmatpush1.msra.mxu0 0.0
    %1114 = vmatprep.subr.mxu0 0.0
    %1115 = vmatpush1.msra.mxu0 0.0
    %1116 = vmatprep.subr.mxu0 0.0
    %1117 = vmatpush1.msra.mxu0 0.0
    %1118 = vmatprep.subr.mxu0 0.0
    %1119 = vmatpush1.msra.mxu0 0.0
    %1120 = vmatprep.mubr.f32.mxu0 0.0
    %1121 = vmatmul.mubr.f32.gmra.mrb[0].mxu0 %v1054
    %v1122 = vpop.f32.mrb[0].mxu0
    %v1123 = vadd.f32 0.0, %v1122
    %v1124 = vpop.f32.mrb[0].mxu0
    %1125 = vdwg.mxu0
    %v1127 = vsel %vm312, %v34, 0
    %1129 = vmatprep.subr.mxu0 0.0
    %1130 = vmatpush1.msra.mxu0 %v846
    %1131 = vmatprep.subr.mxu0 0.0
    %1132 = vmatpush1.msra.mxu0 0.0
    %1133 = vmatprep.subr.mxu0 0.0
    %1134 = vmatpush1.msra.mxu0 0.0
    %1135 = vmatprep.subr.mxu0 0.0
    %1136 = vmatpush1.msra.mxu0 0.0
    %1137 = vmatprep.subr.mxu0 0.0
    %1138 = vmatpush1.msra.mxu0 0.0
    %1139 = vmatprep.subr.mxu0 0.0
    %1140 = vmatpush1.msra.mxu0 0.0
    %1141 = vmatprep.subr.mxu0 0.0
    %1142 = vmatpush1.msra.mxu0 0.0
    %1143 = vmatprep.subr.mxu0 0.0
    %1144 = vmatpush1.msra.mxu0 0.0
    %1145 = vmatprep.subr.mxu0 0.0
    %1146 = vmatpush1.msra.mxu0 0.0
    %1147 = vmatprep.subr.mxu0 0.0
    %1148 = vmatpush1.msra.mxu0 0.0
    %1149 = vmatprep.subr.mxu0 0.0
    %1150 = vmatpush1.msra.mxu0 0.0
    %1151 = vmatprep.subr.mxu0 0.0
    %1152 = vmatpush1.msra.mxu0 0.0
    %1153 = vmatprep.subr.mxu0 0.0
    %1154 = vmatpush1.msra.mxu0 0.0
    %1155 = vmatprep.subr.mxu0 0.0
    %1156 = vmatpush1.msra.mxu0 0.0
    %1157 = vmatprep.subr.mxu0 0.0
    %1158 = vmatpush1.msra.mxu0 0.0
    %1159 = vmatprep.subr.mxu0 0.0
    %1160 = vmatpush1.msra.mxu0 0.0
    %1161 = vmatprep.subr.mxu0 0.0
    %1162 = vmatpush1.msra.mxu0 0.0
    %1163 = vmatprep.subr.mxu0 0.0
    %1164 = vmatpush1.msra.mxu0 0.0
    %1165 = vmatprep.subr.mxu0 0.0
    %1166 = vmatpush1.msra.mxu0 0.0
    %1167 = vmatprep.subr.mxu0 0.0
    %1168 = vmatpush1.msra.mxu0 0.0
    %1169 = vmatprep.subr.mxu0 0.0
    %1170 = vmatpush1.msra.mxu0 0.0
    %1171 = vmatprep.subr.mxu0 0.0
    %1172 = vmatpush1.msra.mxu0 0.0
    %1173 = vmatprep.subr.mxu0 0.0
    %1174 = vmatpush1.msra.mxu0 0.0
    %1175 = vmatprep.subr.mxu0 0.0
    %1176 = vmatpush1.msra.mxu0 0.0
    %1177 = vmatprep.subr.mxu0 0.0
    %1178 = vmatpush1.msra.mxu0 0.0
    %1179 = vmatprep.subr.mxu0 0.0
    %1180 = vmatpush1.msra.mxu0 0.0
    %1181 = vmatprep.subr.mxu0 0.0
    %1182 = vmatpush1.msra.mxu0 0.0
    %1183 = vmatprep.subr.mxu0 0.0
    %1184 = vmatpush1.msra.mxu0 0.0
    %1185 = vmatprep.subr.mxu0 0.0
    %1186 = vmatpush1.msra.mxu0 0.0
    %1187 = vmatprep.subr.mxu0 0.0
    %1188 = vmatpush1.msra.mxu0 0.0
    %1189 = vmatprep.subr.mxu0 0.0
    %1190 = vmatpush1.msra.mxu0 0.0
    %1191 = vmatprep.subr.mxu0 0.0
    %1192 = vmatpush1.msra.mxu0 0.0
    %1193 = vmatprep.mubr.f32.mxu0 0.0
    %1194 = vmatmul.mubr.f32.gmra.mrb[0].mxu0 %v1127
    %v1195 = vpop.f32.mrb[0].mxu0
    %v1196 = vadd.f32 0.0, %v1195
    %v1197 = vpop.f32.mrb[0].mxu0
    %1198 = vdwg.mxu0
    %vm1199 = vcmask 57344
    %v1200 = vsel %vm1199, %v33, 0.0
    %1201 = vadd.xlane.f32.xlu0 %v1200
    %v1202 = vpop.xlane.xlu0 %1201
    %v1203 = vsel %vm1199, %v34, 0.0
    %1204 = vadd.xlane.f32.xlu0 %v1203
    %v1205 = vpop.xlane.xlu0 %1204
    %v1206 = vmax.f32 %v1202, 1e-09
    %v1207 = vmax.f32 %v1205, 1e-09
    %v1208 = vrcp.pop %v1206
    %v1209 = vrcp.pop %v1207
    %v1210 = vmul.f32 %v1123, %v1208
    %v1211 = vmul.f32 %v1196, %v1209
    %v1212 = vld [vmem:[#allocation2 + $0xf2] ss:$0 sm:$0xff]
    %v1215 = vrot.slane %v1211, 7
    %vm1216 = vcmask 1041409
    %v1217 = vsel %vm1216, %v1215, %v1210
    %1218 = vrot.lane.b32.xlu0 %v628, 64
    %v1219 = vpop.permute.xlu0 %1218
    %1220 = vrot.lane.b32.xlu0 %v629, 64
    %v1221 = vpop.permute.xlu0 %1220
    %1222 = vrot.lane.b32.xlu0 %v630, 64
    %v1223 = vpop.permute.xlu0 %1222
    %1224 = vrot.lane.b32.xlu0 %v631, 64
    %v1225 = vpop.permute.xlu0 %1224
    %v1230 = vsel %vm41, %v1217, 0
    %1232 = vmatprep.subr.mxu0 0.0
    %1233 = vmatpush1.msra.mxu0 %v1219
    %1234 = vmatprep.subr.mxu0 0.0
    %1235 = vmatpush1.msra.mxu0 %v1221
    %1236 = vmatprep.subr.mxu0 0.0
    %1237 = vmatpush1.msra.mxu0 %v1223
    %1238 = vmatprep.subr.mxu0 0.0
    %1239 = vmatpush1.msra.mxu0 %v1225
    %1240 = vmatprep.subr.mxu0 0.0
    %1241 = vmatpush1.msra.mxu0 0.0
    %1242 = vmatprep.subr.mxu0 0.0
    %1243 = vmatpush1.msra.mxu0 0.0
    %1244 = vmatprep.subr.mxu0 0.0
    %1245 = vmatpush1.msra.mxu0 0.0
    %1246 = vmatprep.subr.mxu0 0.0
    %1247 = vmatpush1.msra.mxu0 0.0
    %1248 = vmatprep.subr.mxu0 0.0
    %1249 = vmatpush1.msra.mxu0 0.0
    %1250 = vmatprep.subr.mxu0 0.0
    %1251 = vmatpush1.msra.mxu0 0.0
    %1252 = vmatprep.subr.mxu0 0.0
    %1253 = vmatpush1.msra.mxu0 0.0
    %1254 = vmatprep.subr.mxu0 0.0
    %1255 = vmatpush1.msra.mxu0 0.0
    %1256 = vmatprep.subr.mxu0 0.0
    %1257 = vmatpush1.msra.mxu0 0.0
    %1258 = vmatprep.subr.mxu0 0.0
    %1259 = vmatpush1.msra.mxu0 0.0
    %1260 = vmatprep.subr.mxu0 0.0
    %1261 = vmatpush1.msra.mxu0 0.0
    %1262 = vmatprep.subr.mxu0 0.0
    %1263 = vmatpush1.msra.mxu0 0.0
    %1264 = vmatprep.subr.mxu0 0.0
    %1265 = vmatpush1.msra.mxu0 0.0
    %1266 = vmatprep.subr.mxu0 0.0
    %1267 = vmatpush1.msra.mxu0 0.0
    %1268 = vmatprep.subr.mxu0 0.0
    %1269 = vmatpush1.msra.mxu0 0.0
    %1270 = vmatprep.subr.mxu0 0.0
    %1271 = vmatpush1.msra.mxu0 0.0
    %1272 = vmatprep.subr.mxu0 0.0
    %1273 = vmatpush1.msra.mxu0 0.0
    %1274 = vmatprep.subr.mxu0 0.0
    %1275 = vmatpush1.msra.mxu0 0.0
    %1276 = vmatprep.subr.mxu0 0.0
    %1277 = vmatpush1.msra.mxu0 0.0
    %1278 = vmatprep.subr.mxu0 0.0
    %1279 = vmatpush1.msra.mxu0 0.0
    %1280 = vmatprep.subr.mxu0 0.0
    %1281 = vmatpush1.msra.mxu0 0.0
    %1282 = vmatprep.subr.mxu0 0.0
    %1283 = vmatpush1.msra.mxu0 0.0
    %1284 = vmatprep.subr.mxu0 0.0
    %1285 = vmatpush1.msra.mxu0 0.0
    %1286 = vmatprep.subr.mxu0 0.0
    %1287 = vmatpush1.msra.mxu0 0.0
    %1288 = vmatprep.subr.mxu0 0.0
    %1289 = vmatpush1.msra.mxu0 0.0
    %1290 = vmatprep.subr.mxu0 0.0
    %1291 = vmatpush1.msra.mxu0 0.0
    %1292 = vmatprep.subr.mxu0 0.0
    %1293 = vmatpush1.msra.mxu0 0.0
    %1294 = vmatprep.subr.mxu0 0.0
    %1295 = vmatpush1.msra.mxu0 0.0
    %1296 = vmatprep.mubr.f32.mxu0 0.0
    %1297 = vmatmul.mubr.f32.gmra.mrb[0].mxu0 %v1230
    %v1298 = vpop.f32.mrb[0].mxu0
    %v1299 = vadd.f32 %v1212, %v1298
    %v1300 = vpop.f32.mrb[0].mxu0
    %1301 = vdwg.mxu0
    %v1302 = vmax.f32 %v1299, 0.0
    %v1303 = vld [vmem:[#allocation2 + $0xf5] ss:$0 sm:$0xff]
    %1304 = vrot.lane.b32.xlu0 %v628, 16
    %v1305 = vpop.permute.xlu0 %1304
    %1306 = vrot.lane.b32.xlu0 %v629, 16
    %v1307 = vpop.permute.xlu0 %1306
    %1308 = vrot.lane.b32.xlu0 %v630, 16
    %v1309 = vpop.permute.xlu0 %1308
    %1310 = vrot.lane.b32.xlu0 %v631, 16
    %v1311 = vpop.permute.xlu0 %1310
    %v1317 = vsel %vm41, %v1302, 0
    %1319 = vmatprep.subr.mxu0 0.0
    %1320 = vmatpush1.msra.mxu0 %v1305
    %1321 = vmatprep.subr.mxu0 0.0
    %1322 = vmatpush1.msra.mxu0 %v1307
    %1323 = vmatprep.subr.mxu0 0.0
    %1324 = vmatpush1.msra.mxu0 %v1309
    %1325 = vmatprep.subr.mxu0 0.0
    %1326 = vmatpush1.msra.mxu0 %v1311
    %1327 = vmatprep.subr.mxu0 0.0
    %1328 = vmatpush1.msra.mxu0 0.0
    %1329 = vmatprep.subr.mxu0 0.0
    %1330 = vmatpush1.msra.mxu0 0.0
    %1331 = vmatprep.subr.mxu0 0.0
    %1332 = vmatpush1.msra.mxu0 0.0
    %1333 = vmatprep.subr.mxu0 0.0
    %1334 = vmatpush1.msra.mxu0 0.0
    %1335 = vmatprep.subr.mxu0 0.0
    %1336 = vmatpush1.msra.mxu0 0.0
    %1337 = vmatprep.subr.mxu0 0.0
    %1338 = vmatpush1.msra.mxu0 0.0
    %1339 = vmatprep.subr.mxu0 0.0
    %1340 = vmatpush1.msra.mxu0 0.0
    %1341 = vmatprep.subr.mxu0 0.0
    %1342 = vmatpush1.msra.mxu0 0.0
    %1343 = vmatprep.subr.mxu0 0.0
    %1344 = vmatpush1.msra.mxu0 0.0
    %1345 = vmatprep.subr.mxu0 0.0
    %1346 = vmatpush1.msra.mxu0 0.0
    %1347 = vmatprep.subr.mxu0 0.0
    %1348 = vmatpush1.msra.mxu0 0.0
    %1349 = vmatprep.subr.mxu0 0.0
    %1350 = vmatpush1.msra.mxu0 0.0
    %1351 = vmatprep.subr.mxu0 0.0
    %1352 = vmatpush1.msra.mxu0 0.0
    %1353 = vmatprep.subr.mxu0 0.0
    %1354 = vmatpush1.msra.mxu0 0.0
    %1355 = vmatprep.subr.mxu0 0.0
    %1356 = vmatpush1.msra.mxu0 0.0
    %1357 = vmatprep.subr.mxu0 0.0
    %1358 = vmatpush1.msra.mxu0 0.0
    %1359 = vmatprep.subr.mxu0 0.0
    %1360 = vmatpush1.msra.mxu0 0.0
    %1361 = vmatprep.subr.mxu0 0.0
    %1362 = vmatpush1.msra.mxu0 0.0
    %1363 = vmatprep.subr.mxu0 0.0
    %1364 = vmatpush1.msra.mxu0 0.0
    %1365 = vmatprep.subr.mxu0 0.0
    %1366 = vmatpush1.msra.mxu0 0.0
    %1367 = vmatprep.subr.mxu0 0.0
    %1368 = vmatpush1.msra.mxu0 0.0
    %1369 = vmatprep.subr.mxu0 0.0
    %1370 = vmatpush1.msra.mxu0 0.0
    %1371 = vmatprep.subr.mxu0 0.0
    %1372 = vmatpush1.msra.mxu0 0.0
    %1373 = vmatprep.subr.mxu0 0.0
    %1374 = vmatpush1.msra.mxu0 0.0
    %1375 = vmatprep.subr.mxu0 0.0
    %1376 = vmatpush1.msra.mxu0 0.0
    %1377 = vmatprep.subr.mxu0 0.0
    %1378 = vmatpush1.msra.mxu0 0.0
    %1379 = vmatprep.subr.mxu0 0.0
    %1380 = vmatpush1.msra.mxu0 0.0
    %1381 = vmatprep.subr.mxu0 0.0
    %1382 = vmatpush1.msra.mxu0 0.0
    %1383 = vmatprep.mubr.f32.mxu0 0.0
    %1384 = vmatmul.mubr.f32.gmra.mrb[0].mxu0 %v1317
    %v1385 = vpop.f32.mrb[0].mxu0
    %v1386 = vadd.f32 %v1303, %v1385
    %v1387 = vpop.f32.mrb[0].mxu0
    %1388 = vdwg.mxu0
    %v1389 = vmax.f32 %v1386, 0.0
    %v1390 = vld [vmem:[#allocation2 + $0xc8] sm:$0xff]
    %v1391 = vld [vmem:[#allocation2 + $0xd8] sm:$0xff]
    %v1392 = vld [vmem:[#allocation2 + $0xf6] ss:$0 sm:$0xff]
    %v1394 = vsel %vm950, %v1389, 0
    %1396 = vmatprep.subr.mxu0 0.0
    %1397 = vmatpush1.msra.mxu0 %v1390
    %1398 = vmatprep.subr.mxu0 0.0
    %1399 = vmatpush1.msra.mxu0 %v1391
    %1400 = vmatprep.subr.mxu0 0.0
    %1401 = vmatpush1.msra.mxu0 0.0
    %1402 = vmatprep.subr.mxu0 0.0
    %1403 = vmatpush1.msra.mxu0 0.0
    %1404 = vmatprep.subr.mxu0 0.0
    %1405 = vmatpush1.msra.mxu0 0.0
    %1406 = vmatprep.subr.mxu0 0.0
    %1407 = vmatpush1.msra.mxu0 0.0
    %1408 = vmatprep.subr.mxu0 0.0
    %1409 = vmatpush1.msra.mxu0 0.0
    %1410 = vmatprep.subr.mxu0 0.0
    %1411 = vmatpush1.msra.mxu0 0.0
    %1412 = vmatprep.subr.mxu0 0.0
    %1413 = vmatpush1.msra.mxu0 0.0
    %1414 = vmatprep.subr.mxu0 0.0
    %1415 = vmatpush1.msra.mxu0 0.0
    %1416 = vmatprep.subr.mxu0 0.0
    %1417 = vmatpush1.msra.mxu0 0.0
    %1418 = vmatprep.subr.mxu0 0.0
    %1419 = vmatpush1.msra.mxu0 0.0
    %1420 = vmatprep.subr.mxu0 0.0
    %1421 = vmatpush1.msra.mxu0 0.0
    %1422 = vmatprep.subr.mxu0 0.0
    %1423 = vmatpush1.msra.mxu0 0.0
    %1424 = vmatprep.subr.mxu0 0.0
    %1425 = vmatpush1.msra.mxu0 0.0
    %1426 = vmatprep.subr.mxu0 0.0
    %1427 = vmatpush1.msra.mxu0 0.0
    %1428 = vmatprep.subr.mxu0 0.0
    %1429 = vmatpush1.msra.mxu0 0.0
    %1430 = vmatprep.subr.mxu0 0.0
    %1431 = vmatpush1.msra.mxu0 0.0
    %1432 = vmatprep.subr.mxu0 0.0
    %1433 = vmatpush1.msra.mxu0 0.0
    %1434 = vmatprep.subr.mxu0 0.0
    %1435 = vmatpush1.msra.mxu0 0.0
    %1436 = vmatprep.subr.mxu0 0.0
    %1437 = vmatpush1.msra.mxu0 0.0
    %1438 = vmatprep.subr.mxu0 0.0
    %1439 = vmatpush1.msra.mxu0 0.0
    %1440 = vmatprep.subr.mxu0 0.0
    %1441 = vmatpush1.msra.mxu0 0.0
    %1442 = vmatprep.subr.mxu0 0.0
    %1443 = vmatpush1.msra.mxu0 0.0
    %1444 = vmatprep.subr.mxu0 0.0
    %1445 = vmatpush1.msra.mxu0 0.0
    %1446 = vmatprep.subr.mxu0 0.0
    %1447 = vmatpush1.msra.mxu0 0.0
    %1448 = vmatprep.subr.mxu0 0.0
    %1449 = vmatpush1.msra.mxu0 0.0
    %1450 = vmatprep.subr.mxu0 0.0
    %1451 = vmatpush1.msra.mxu0 0.0
    %1452 = vmatprep.subr.mxu0 0.0
    %1453 = vmatpush1.msra.mxu0 0.0
    %1454 = vmatprep.subr.mxu0 0.0
    %1455 = vmatpush1.msra.mxu0 0.0
    %1456 = vmatprep.subr.mxu0 0.0
    %1457 = vmatpush1.msra.mxu0 0.0
    %1458 = vmatprep.subr.mxu0 0.0
    %1459 = vmatpush1.msra.mxu0 0.0
    %1460 = vmatprep.mubr.f32.mxu0 0.0
    %1461 = vmatmul.mubr.f32.gmra.mrb[0].mxu0 %v1394
    %v1462 = vpop.f32.mrb[0].mxu0
    %v1463 = vadd.f32 %v1392, %v1462
    %v1464 = vpop.f32.mrb[0].mxu0
    %1465 = vdwg.mxu0
    %1466 = vst [vmem:[%s4] sm:$0xff] %v1051
    %1467 = vst [vmem:[%s4 + $0x8] sm:$0xff] %v1052
    %v1470 = vunpack.c.l.s4 1966171168
    %v1471 = vunpack.c.0.s8 %v1470
    %v1472 = vlaneseq
    %v1473 = vshrl.u32 %v1472, 7
    %v1474 = vsub.s32 %v1471, %v1473
    %v1475 = vrot.slane %v1463, %v1474
    %v1476 = vcombine.high %v1475, %v1475
    %v1478 = vunpack.c.l.s4 1966171168
    %v1479 = vunpack.c.0.s8 %v1478
    %v1480 = vlaneseq
    %v1481 = vshrl.u32 %v1480, 7
    %v1482 = vsub.s32 %v1479, %v1481
    %v1483 = vrot.slane %v1475, %v1482
    %v1485 = vunpack.c.l.s4 1966171168
    %v1486 = vunpack.c.0.s8 %v1485
    %v1487 = vlaneseq
    %v1488 = vshrl.u32 %v1487, 7
    %v1489 = vsub.s32 %v1486, %v1488
    %v1490 = vrot.slane %v1476, %v1489
    %v1491 = vlaneseq
    %v1492 = vshrl.u32 %v1491, 7
    %v1493 = vsub.s32 0, %v1492
    %v1494 = vrot.slane %v1483, %v1493
    %v1495 = vlaneseq
    %v1496 = vshrl.u32 %v1495, 7
    %v1497 = vsub.s32 0, %v1496
    %v1498 = vrot.slane %v1490, %v1497
    %1499 = vrot.lane.b32.xlu0 %v1494, 64
    %v1500 = vpop.permute.xlu0 %1499
    %1501 = vrot.lane.b32.xlu0 %v1498, 64
    %v1502 = vpop.permute.xlu0 %1501
    %vm1505 = vcmask 1040896
    %1506 = vst.msk [vmem:[%s4] sm:$0x1] %vm1505, %v1500
    %1507 = vst.msk [vmem:[%s4 + $0x8] sm:$0x1] %vm1505, %v1502
    // Predicated region
    $region22: #{multitask_bert_forward.1} parent=1 // pred_check
      _
    $region23: #{multitask_bert_forward.1} parent=1 // pred_check_branch
      %1509 = sbr.rel (0) target = $region25
    $region24: #{multitask_bert_forward.1} parent=1 // pred_region
      _
    $region25: #{multitask_bert_forward.1} parent=1 // pred_fallthru
      _
    // Predicated region
    $region26: #{multitask_bert_forward.1} parent=1 // pred_check
      _
    $region27: #{multitask_bert_forward.1} parent=1 // pred_check_branch
      %1511 = sbr.rel (0) target = $region29
    $region28: #{multitask_bert_forward.1} parent=1 // pred_region
      _
    $region29: #{multitask_bert_forward.1} parent=1 // pred_fallthru
      _
    %1512 = vsyncpa [#allocation3], 1

</llo_original>
